<compile_context>
chip_gen: v7x
topology: tpu7x:2x2x1
jax: 0.10.0
libtpu: 0.0.40
codegen_flags: <defaults>
</compile_context>

<pallas_src>
import functools
import math

import jax
import jax.numpy as jnp
from jax.experimental import pallas as pl
from jax.experimental.pallas import tpu as pltpu

LANE = 128


def _round_up(v: int, m: int) -> int:
    return (v + m - 1) // m * m


def _pad_to(arr, shape):
    pads = [(0, t - s) for s, t in zip(arr.shape, shape)]
    return jnp.pad(arr, pads)


def _vmem_capacity_bytes() -> int:
    """Physical VMEM per TensorCore; conservative fallback (v7x) if query fails."""
    try:
        return int(pltpu.get_tpu_info().vmem_capacity_bytes)
    except Exception:  # pragma: no cover - defensive
        return 64 * 2**20


def _log_softmax_masked(out, nlabel):
    lane_ids = jax.lax.broadcasted_iota(jnp.int32, out.shape, 1)
    masked = jnp.where(lane_ids < nlabel, out, -1e30)
    m = jnp.max(masked, axis=-1, keepdims=True)
    shifted = masked - m
    lse = jnp.log(jnp.sum(jnp.exp(shifted), axis=-1, keepdims=True))
    return shifted - lse


# ---------------------------------------------------------------------------
# Fused kernel: all layers in one pallas_call, A resident in VMEM.
# ---------------------------------------------------------------------------
def _fused_sage_kernel(a_ref, invd_ref, x_ref, w_ref, b_ref, o_ref, *,
                       num_layers: int, nlabel: int):
    """a:[Np,Np]bf16  invd:[Np,1]f32  x:[Np,Fp]bf16  w:[L,2,Fp,Fp]bf16  b:[L,1,Fp]f32."""
    a = a_ref[...]
    invd = invd_ref[...]
    x = x_ref[...]
    for l in range(num_layers):
        w_layer = w_ref[l]                                             # [2, Fp, Fp]
        w_l, w_r = w_layer[0], w_layer[1]
        h_l = jnp.dot(x, w_l, preferred_element_type=jnp.float32)      # [Np, Fp]
        h_r = jnp.dot(x, w_r, preferred_element_type=jnp.float32)      # [Np, Fp]
        agg = jnp.dot(a, h_l.astype(jnp.bfloat16),
                      preferred_element_type=jnp.float32)              # [Np, Fp]
        out = invd * agg + h_r + b_ref[l]
        if l < num_layers - 1:
            # ReLU (dropout is identity in eval mode); next layer reads bf16
            x = jnp.maximum(out, 0.0).astype(jnp.bfloat16)
        else:
            o_ref[...] = _log_softmax_masked(out, nlabel).astype(o_ref.dtype)


def _fused_forward(a, inv_deg, x, w_all, b_all, *, nlabel, num_layers, vmem_limit):
    n_pad, fp = x.shape
    kernel = functools.partial(_fused_sage_kernel, num_layers=num_layers,
                               nlabel=nlabel)
    return pl.pallas_call(
        kernel,
        out_shape=jax.ShapeDtypeStruct((n_pad, fp), jnp.float32),
        in_specs=[pl.BlockSpec(memory_space=pltpu.VMEM)] * 5,
        out_specs=pl.BlockSpec(memory_space=pltpu.VMEM),
        compiler_params=pltpu.CompilerParams(vmem_limit_bytes=vmem_limit),
    )(a, inv_deg, x, w_all, b_all)


# ---------------------------------------------------------------------------
# Tiled path: one kernel per layer (X@W_l fused into the aggregation).
# ---------------------------------------------------------------------------
def _sage_layer_kernel(a_ref, xk_ref, xi_ref, invd_ref, w_ref, b_ref,
                       o_ref, acc_ref, *,
                       apply_relu: bool, apply_log_softmax: bool, nlabel: int):
    """Grid = (rows, k).  a:[tm,tk]bf16  xk:[tk,Fp]bf16  xi:[tm,Fp]bf16
    invd:[tm,1]f32  w:[2,Fp,Fp]bf16  b:[1,Fp]f32  o:[tm,Fp]  acc:[tm,Fp]f32."""
    k = pl.program_id(1)

    @pl.when(k == 0)
    def _():
        acc_ref[...] = jnp.zeros_like(acc_ref)

    # Recompute the neighbor-transform for this k-slice of X instead of
    # streaming an H_l matrix from HBM (trades fp/tile_m extra MXU flops for
    # zero extra HBM bytes; the kernel is HBM-bound).
    h_l = jnp.dot(xk_ref[...], w_ref[0],
                  preferred_element_type=jnp.float32).astype(jnp.bfloat16)
    acc_ref[...] += jnp.dot(a_ref[...], h_l, preferred_element_type=jnp.float32)

    @pl.when(k == pl.num_programs(1) - 1)
    def _():
        h_r = jnp.dot(xi_ref[...], w_ref[1], preferred_element_type=jnp.float32)
        out = invd_ref[...] * acc_ref[...] + h_r + b_ref[...]
        if apply_relu:
            out = jnp.maximum(out, 0.0)
        if apply_log_softmax:
            out = _log_softmax_masked(out, nlabel)
        o_ref[...] = out.astype(o_ref.dtype)


def _sage_layer_tiled(a, x, inv_deg, w, bias, *, last: bool, nlabel: int,
                      tile_m: int, tile_k: int, vmem_cap: int):
    n_pad = a.shape[0]
    fp = w.shape[-1]
    out_dtype = jnp.float32 if last else jnp.bfloat16
    kernel = functools.partial(_sage_layer_kernel,
                               apply_relu=not last,
                               apply_log_softmax=last,
                               nlabel=nlabel)
    # double-buffered streaming blocks + resident scratch / weights
    vmem_need = (2 * tile_m * tile_k * 2      # A tile (bf16)
                 + 2 * tile_k * fp * 2        # X k-slice (bf16)
                 + 2 * tile_m * fp * 2        # X row-slice (bf16)
                 + 2 * tile_m * 4             # inv_deg
                 + 2 * tile_m * fp * 4        # output
                 + tile_m * fp * 4            # accumulator
                 + w.nbytes + bias.nbytes)
    vmem_limit = int(min(vmem_cap - 4 * 2**20, max(vmem_need * 2, 32 * 2**20)))
    return pl.pallas_call(
        kernel,
        out_shape=jax.ShapeDtypeStruct((n_pad, fp), out_dtype),
        grid_spec=pltpu.PrefetchScalarGridSpec(
            num_scalar_prefetch=0,
            grid=(n_pad // tile_m, n_pad // tile_k),
            in_specs=[
                pl.BlockSpec((tile_m, tile_k), lambda i, k: (i, k)),   # A tile
                pl.BlockSpec((tile_k, fp), lambda i, k: (k, 0)),       # X (k-slice)
                pl.BlockSpec((tile_m, fp), lambda i, k: (i, 0)),       # X (rows, root)
                pl.BlockSpec((tile_m, 1), lambda i, k: (i, 0)),        # inv_deg
                pl.BlockSpec((2, fp, fp), lambda i, k: (0, 0, 0)),     # W_l | W_r
                pl.BlockSpec((1, fp), lambda i, k: (0, 0)),            # bias
            ],
            out_specs=pl.BlockSpec((tile_m, fp), lambda i, k: (i, 0)),
            scratch_shapes=[pltpu.VMEM((tile_m, fp), jnp.float32)],
        ),
        compiler_params=pltpu.CompilerParams(
            dimension_semantics=("parallel", "arbitrary"),
            vmem_limit_bytes=vmem_limit),
    )(a, x, x, inv_deg, w, bias)


def _pick_tiles(n: int, fp: int, tile_m=None, max_tile_k=2048):
    """Choose (n_pad, tile_m, tile_k): big rectangular tiles, VMEM-bounded."""
    if tile_m is None:
        tile_m = 512 if n >= 2048 else 256
    # keep per-step A / X streaming blocks to a few MiB each
    bytes_cap = 2 * 2**20
    k_cap = (bytes_cap // max(tile_m * 2, fp * 2)) // tile_m * tile_m
    max_tk = max(tile_m, min(max_tile_k, max(k_cap, tile_m)))
    n_pad = _round_up(n, tile_m)
    q = n_pad // tile_m
    best = 1
    for d in range(1, q + 1):
        if q % d == 0 and d * tile_m <= max_tk:
            best = d
    return n_pad, tile_m, best * tile_m


# ---------------------------------------------------------------------------
# Host-side glue: adjacency, parameter packing, forward dispatch.
# ---------------------------------------------------------------------------
def build_adjacency(edge_index, num_nodes, edge_weight=None):
    """Dense UNNORMALIZED adjacency + 1/deg (PyG SAGEConv mean aggregation:
    messages are x_j * w_ij, mean divides by the incoming-edge count)."""
    src, dst = edge_index[0], edge_index[1]
    if edge_weight is None:
        edge_weight = jnp.ones((edge_index.shape[1],), dtype=jnp.float32)
    a = jnp.zeros((num_nodes, num_nodes), dtype=jnp.float32)
    a = a.at[dst, src].add(edge_weight.astype(jnp.float32))
    deg = jnp.zeros((num_nodes,), dtype=jnp.float32).at[dst].add(1.0)
    inv_deg = 1.0 / jnp.maximum(deg, 1.0)
    return a, inv_deg


def pack_params(params):
    """Pad per-layer (w_l, w_r, b) to lane-dense stacks [L,2,Fp,Fp] / [L,1,Fp]."""
    dims = [w_l.shape[0] for w_l, _, _ in params] + [params[-1][0].shape[1]]
    fp = _round_up(max(dims), LANE)
    w_all, b_all = [], []
    for w_l, w_r, b in params:
        f_in, f_out = w_l.shape
        w = jnp.zeros((2, fp, fp), jnp.float32)
        w = w.at[0, :f_in, :f_out].set(w_l)
        w = w.at[1, :f_in, :f_out].set(w_r)
        w_all.append(w)
        b_all.append(_pad_to(b.reshape(1, -1).astype(jnp.float32), (1, fp)))
    return jnp.stack(w_all).astype(jnp.bfloat16), jnp.stack(b_all), fp


def simple_model_large_forward(x, edge_index, params, edge_weight=None, *,
                               tile_m=None, max_tile_k=2048,
                               force_tiled=False, fused_vmem_budget=None):
    """(SAGEConv -> ReLU -> dropout)* -> SAGEConv -> log_softmax."""
    n = x.shape[0]
    nlabel = params[-1][0].shape[1]
    num_layers = len(params)
    w_all, b_all, fp = pack_params(params)

    vmem_cap = _vmem_capacity_bytes()
    if fused_vmem_budget is None:
        # generation-aware: ~35 MiB on v7x (64 MiB VMEM/TC), ~70 MiB on v5e/v6e.
        fused_vmem_budget = int(vmem_cap * 0.55)

    # conservative live-bytes estimate for the fused (unrolled, gridless) kernel
    n_pad_f = _round_up(n, LANE)
    need_fused = (2 * n_pad_f * n_pad_f                 # A bf16
                  + 4 * n_pad_f                         # inv_deg
                  + 2 * n_pad_f * fp                    # x bf16
                  + w_all.nbytes + b_all.nbytes
                  + 4 * n_pad_f * fp                    # output f32
                  + 40 * n_pad_f * fp)                  # per-layer temporaries + slack
    use_fused = (not force_tiled) and (need_fused <= fused_vmem_budget)

    if use_fused:
        n_pad = n_pad_f
    else:
        n_pad, tile_m, tile_k = _pick_tiles(n, fp, tile_m=tile_m,
                                            max_tile_k=max_tile_k)

    a, inv_deg = build_adjacency(edge_index, n, edge_weight)
    a = _pad_to(a, (n_pad, n_pad)).astype(jnp.bfloat16)
    inv_deg = _pad_to(inv_deg.reshape(-1, 1), (n_pad, 1)).astype(jnp.float32)
    x_p = _pad_to(x.astype(jnp.float32), (n_pad, fp)).astype(jnp.bfloat16)

    if use_fused:
        vmem_limit = int(min(vmem_cap - 4 * 2**20,
                             max(need_fused * 3 // 2, 32 * 2**20)))
        out = _fused_forward(a, inv_deg, x_p, w_all, b_all, nlabel=nlabel,
                             num_layers=num_layers, vmem_limit=vmem_limit)
    else:
        h = x_p
        for l in range(num_layers):
            last = l == num_layers - 1
            h = _sage_layer_tiled(a, h, inv_deg, w_all[l], b_all[l],
                                  last=last, nlabel=nlabel,
                                  tile_m=tile_m, tile_k=tile_k,
                                  vmem_cap=vmem_cap)
        out = h
    return out[:n, :nlabel]


def init_params(key, nfeat, nhid, nlabel, num_layers):
    """SAGEConv shapes: lin_l (with bias) on aggregated neighbors, lin_r on root."""
    dims = [nfeat] + [nhid] * (num_layers - 1) + [nlabel]
    params = []
    for i in range(num_layers):
        f_in, f_out = dims[i], dims[i + 1]
        key, k1, k2 = jax.random.split(key, 3)
        scale = 1.0 / math.sqrt(f_in)
        w_l = jax.random.uniform(k1, (f_in, f_out), jnp.float32, -scale, scale)
        w_r = jax.random.uniform(k2, (f_in, f_out), jnp.float32, -scale, scale)
        b = jnp.zeros((f_out,), jnp.float32)
        params.append((w_l, w_r, b))
    return params


def reference_forward(x, edge_index, params, edge_weight=None):
    """Pure-JAX f32 reference of the module's forward (eval mode)."""
    a, inv_deg = build_adjacency(edge_index, x.shape[0], edge_weight)
    num_layers = len(params)
    h = x
    for i, (w_l, w_r, b) in enumerate(params):
        agg = inv_deg[:, None] * (a @ h)
        out = agg @ w_l + h @ w_r + b
        h = jax.nn.relu(out) if i < num_layers - 1 else jax.nn.log_softmax(out, -1)
    return h


if __name__ == "__main__":
    NFEAT, NHID, NLABEL, NUM_LAYERS = 32, 32, 8, 3

    key = jax.random.PRNGKey(0)
    kp, k1, k2, k3, k4 = jax.random.split(key, 5)
    params = init_params(kp, NFEAT, NHID, NLABEL, NUM_LAYERS)

    # --- small graph: exercises the fused (A-resident, layers-fused) path ---
    N1, E1 = 16, 48
    x1 = jax.random.normal(k1, (N1, NFEAT), dtype=jnp.float32)
    ei1 = jax.random.randint(k2, (2, E1), 0, N1, dtype=jnp.int32)
    out1 = jax.block_until_ready(simple_model_large_forward(x1, ei1, params))
    ref1 = reference_forward(x1, ei1, params)
    assert out1.shape == (N1, NLABEL), out1.shape
    assert jnp.allclose(jax.scipy.special.logsumexp(out1, axis=-1), 0.0, atol=1e-3)
    assert float(jnp.max(jnp.abs(out1 - ref1))) < 0.25

    # --- bigger graph: exercises the tiled (row, k)-grid accumulation path --
    N2, E2 = 200, 800
    x2 = jax.random.normal(k3, (N2, NFEAT), dtype=jnp.float32)
    ei2 = jax.random.randint(k4, (2, E2), 0, N2, dtype=jnp.int32)
    out2 = jax.block_until_ready(simple_model_large_forward(
        x2, ei2, params, force_tiled=True, tile_m=128, max_tile_k=128))
    ref2 = reference_forward(x2, ei2, params)
    assert out2.shape == (N2, NLABEL), out2.shape
    assert jnp.allclose(jax.scipy.special.logsumexp(out2, axis=-1), 0.0, atol=1e-3)
    assert float(jnp.max(jnp.abs(out2 - ref2))) < 0.25

    print("KERNEL_OK")
</pallas_src>

<mosaic_0001>
module attributes {stable_mosaic.version = 11 : i64} {
  func.func @_fused_sage_kernel(%arg0: memref<128x128xbf16, #tpu.memory_space<vmem>>, %arg1: memref<128x1xf32, #tpu.memory_space<vmem>>, %arg2: memref<128x128xbf16, #tpu.memory_space<vmem>>, %arg3: memref<3x2x128x128xbf16, #tpu.memory_space<vmem>>, %arg4: memref<3x1x128xf32, #tpu.memory_space<vmem>>, %arg5: memref<128x128xf32, #tpu.memory_space<vmem>>) attributes {dimension_semantics = [], scalar_prefetch = 0 : i64, scratch_operands = 0 : i64, tpu.core_type = #tpu.core_type<tc>} {
    %c0 = arith.constant 0 : index
    %c0_0 = arith.constant 0 : index
    %0 = vector.load %arg0[%c0, %c0_0] : memref<128x128xbf16, #tpu.memory_space<vmem>>, vector<128x128xbf16>
    %c0_1 = arith.constant 0 : index
    %c0_2 = arith.constant 0 : index
    %1 = vector.load %arg1[%c0_1, %c0_2] : memref<128x1xf32, #tpu.memory_space<vmem>>, vector<128x1xf32>
    %c0_3 = arith.constant 0 : index
    %c0_4 = arith.constant 0 : index
    %2 = vector.load %arg2[%c0_3, %c0_4] : memref<128x128xbf16, #tpu.memory_space<vmem>>, vector<128x128xbf16>
    %c0_5 = arith.constant 0 : index
    %c0_6 = arith.constant 0 : index
    %c0_7 = arith.constant 0 : index
    %c0_8 = arith.constant 0 : index
    %3 = vector.load %arg3[%c0_5, %c0_6, %c0_7, %c0_8] : memref<3x2x128x128xbf16, #tpu.memory_space<vmem>>, vector<1x2x128x128xbf16>
    %4 = vector.shape_cast %3 : vector<1x2x128x128xbf16> to vector<2x128x128xbf16>
    %5 = vector.extract_strided_slice %4 {offsets = [0, 0, 0], sizes = [1, 128, 128], strides = [1, 1, 1]} : vector<2x128x128xbf16> to vector<1x128x128xbf16>
    %6 = vector.shape_cast %5 : vector<1x128x128xbf16> to vector<128x128xbf16>
    %7 = vector.extract_strided_slice %4 {offsets = [1, 0, 0], sizes = [1, 128, 128], strides = [1, 1, 1]} : vector<2x128x128xbf16> to vector<1x128x128xbf16>
    %8 = vector.shape_cast %7 : vector<1x128x128xbf16> to vector<128x128xbf16>
    %cst = arith.constant dense<0.000000e+00> : vector<128x128xf32>
    %9 = tpu.matmul %2, %6, %cst {dimension_numbers = #tpu.dot_dimension_numbers<[1], [0], [0], [1], [0, 0, 1, 1], [], []>} : vector<128x128xbf16>, vector<128x128xbf16>, vector<128x128xf32> -> vector<128x128xf32>
    %cst_9 = arith.constant dense<0.000000e+00> : vector<128x128xf32>
    %10 = tpu.matmul %2, %8, %cst_9 {dimension_numbers = #tpu.dot_dimension_numbers<[1], [0], [0], [1], [0, 0, 1, 1], [], []>} : vector<128x128xbf16>, vector<128x128xbf16>, vector<128x128xf32> -> vector<128x128xf32>
    %11 = arith.truncf %9 : vector<128x128xf32> to vector<128x128xbf16>
    %cst_10 = arith.constant dense<0.000000e+00> : vector<128x128xf32>
    %12 = tpu.matmul %0, %11, %cst_10 {dimension_numbers = #tpu.dot_dimension_numbers<[1], [0], [0], [1], [0, 0, 1, 1], [], []>} : vector<128x128xbf16>, vector<128x128xbf16>, vector<128x128xf32> -> vector<128x128xf32>
    %13 = vector.broadcast %1 : vector<128x1xf32> to vector<128x128xf32>
    %14 = arith.mulf %13, %12 : vector<128x128xf32>
    %15 = arith.addf %14, %10 : vector<128x128xf32>
    %c0_11 = arith.constant 0 : index
    %c0_12 = arith.constant 0 : index
    %c0_13 = arith.constant 0 : index
    %16 = vector.load %arg4[%c0_11, %c0_12, %c0_13] : memref<3x1x128xf32, #tpu.memory_space<vmem>>, vector<1x1x128xf32>
    %17 = vector.shape_cast %16 : vector<1x1x128xf32> to vector<1x128xf32>
    %18 = vector.broadcast %17 : vector<1x128xf32> to vector<128x128xf32>
    %19 = arith.addf %15, %18 : vector<128x128xf32>
    %cst_14 = arith.constant 0.000000e+00 : f32
    %20 = vector.broadcast %cst_14 : f32 to vector<128x128xf32>
    %21 = arith.maximumf %19, %20 : vector<128x128xf32>
    %22 = arith.truncf %21 : vector<128x128xf32> to vector<128x128xbf16>
    %c1 = arith.constant 1 : index
    %c0_15 = arith.constant 0 : index
    %c0_16 = arith.constant 0 : index
    %c0_17 = arith.constant 0 : index
    %23 = vector.load %arg3[%c1, %c0_15, %c0_16, %c0_17] : memref<3x2x128x128xbf16, #tpu.memory_space<vmem>>, vector<1x2x128x128xbf16>
    %24 = vector.shape_cast %23 : vector<1x2x128x128xbf16> to vector<2x128x128xbf16>
    %25 = vector.extract_strided_slice %24 {offsets = [0, 0, 0], sizes = [1, 128, 128], strides = [1, 1, 1]} : vector<2x128x128xbf16> to vector<1x128x128xbf16>
    %26 = vector.shape_cast %25 : vector<1x128x128xbf16> to vector<128x128xbf16>
    %27 = vector.extract_strided_slice %24 {offsets = [1, 0, 0], sizes = [1, 128, 128], strides = [1, 1, 1]} : vector<2x128x128xbf16> to vector<1x128x128xbf16>
    %28 = vector.shape_cast %27 : vector<1x128x128xbf16> to vector<128x128xbf16>
    %cst_18 = arith.constant dense<0.000000e+00> : vector<128x128xf32>
    %29 = tpu.matmul %22, %26, %cst_18 {dimension_numbers = #tpu.dot_dimension_numbers<[1], [0], [0], [1], [0, 0, 1, 1], [], []>} : vector<128x128xbf16>, vector<128x128xbf16>, vector<128x128xf32> -> vector<128x128xf32>
    %cst_19 = arith.constant dense<0.000000e+00> : vector<128x128xf32>
    %30 = tpu.matmul %22, %28, %cst_19 {dimension_numbers = #tpu.dot_dimension_numbers<[1], [0], [0], [1], [0, 0, 1, 1], [], []>} : vector<128x128xbf16>, vector<128x128xbf16>, vector<128x128xf32> -> vector<128x128xf32>
    %31 = arith.truncf %29 : vector<128x128xf32> to vector<128x128xbf16>
    %cst_20 = arith.constant dense<0.000000e+00> : vector<128x128xf32>
    %32 = tpu.matmul %0, %31, %cst_20 {dimension_numbers = #tpu.dot_dimension_numbers<[1], [0], [0], [1], [0, 0, 1, 1], [], []>} : vector<128x128xbf16>, vector<128x128xbf16>, vector<128x128xf32> -> vector<128x128xf32>
    %33 = vector.broadcast %1 : vector<128x1xf32> to vector<128x128xf32>
    %34 = arith.mulf %33, %32 : vector<128x128xf32>
    %35 = arith.addf %34, %30 : vector<128x128xf32>
    %c1_21 = arith.constant 1 : index
    %c0_22 = arith.constant 0 : index
    %c0_23 = arith.constant 0 : index
    %36 = vector.load %arg4[%c1_21, %c0_22, %c0_23] : memref<3x1x128xf32, #tpu.memory_space<vmem>>, vector<1x1x128xf32>
    %37 = vector.shape_cast %36 : vector<1x1x128xf32> to vector<1x128xf32>
    %38 = vector.broadcast %37 : vector<1x128xf32> to vector<128x128xf32>
    %39 = arith.addf %35, %38 : vector<128x128xf32>
    %cst_24 = arith.constant 0.000000e+00 : f32
    %40 = vector.broadcast %cst_24 : f32 to vector<128x128xf32>
    %41 = arith.maximumf %39, %40 : vector<128x128xf32>
    %42 = arith.truncf %41 : vector<128x128xf32> to vector<128x128xbf16>
    %c2 = arith.constant 2 : index
    %c0_25 = arith.constant 0 : index
    %c0_26 = arith.constant 0 : index
    %c0_27 = arith.constant 0 : index
    %43 = vector.load %arg3[%c2, %c0_25, %c0_26, %c0_27] : memref<3x2x128x128xbf16, #tpu.memory_space<vmem>>, vector<1x2x128x128xbf16>
    %44 = vector.shape_cast %43 : vector<1x2x128x128xbf16> to vector<2x128x128xbf16>
    %45 = vector.extract_strided_slice %44 {offsets = [0, 0, 0], sizes = [1, 128, 128], strides = [1, 1, 1]} : vector<2x128x128xbf16> to vector<1x128x128xbf16>
    %46 = vector.shape_cast %45 : vector<1x128x128xbf16> to vector<128x128xbf16>
    %47 = vector.extract_strided_slice %44 {offsets = [1, 0, 0], sizes = [1, 128, 128], strides = [1, 1, 1]} : vector<2x128x128xbf16> to vector<1x128x128xbf16>
    %48 = vector.shape_cast %47 : vector<1x128x128xbf16> to vector<128x128xbf16>
    %cst_28 = arith.constant dense<0.000000e+00> : vector<128x128xf32>
    %49 = tpu.matmul %42, %46, %cst_28 {dimension_numbers = #tpu.dot_dimension_numbers<[1], [0], [0], [1], [0, 0, 1, 1], [], []>} : vector<128x128xbf16>, vector<128x128xbf16>, vector<128x128xf32> -> vector<128x128xf32>
    %cst_29 = arith.constant dense<0.000000e+00> : vector<128x128xf32>
    %50 = tpu.matmul %42, %48, %cst_29 {dimension_numbers = #tpu.dot_dimension_numbers<[1], [0], [0], [1], [0, 0, 1, 1], [], []>} : vector<128x128xbf16>, vector<128x128xbf16>, vector<128x128xf32> -> vector<128x128xf32>
    %51 = arith.truncf %49 : vector<128x128xf32> to vector<128x128xbf16>
    %cst_30 = arith.constant dense<0.000000e+00> : vector<128x128xf32>
    %52 = tpu.matmul %0, %51, %cst_30 {dimension_numbers = #tpu.dot_dimension_numbers<[1], [0], [0], [1], [0, 0, 1, 1], [], []>} : vector<128x128xbf16>, vector<128x128xbf16>, vector<128x128xf32> -> vector<128x128xf32>
    %53 = vector.broadcast %1 : vector<128x1xf32> to vector<128x128xf32>
    %54 = arith.mulf %53, %52 : vector<128x128xf32>
    %55 = arith.addf %54, %50 : vector<128x128xf32>
    %c2_31 = arith.constant 2 : index
    %c0_32 = arith.constant 0 : index
    %c0_33 = arith.constant 0 : index
    %56 = vector.load %arg4[%c2_31, %c0_32, %c0_33] : memref<3x1x128xf32, #tpu.memory_space<vmem>>, vector<1x1x128xf32>
    %57 = vector.shape_cast %56 : vector<1x1x128xf32> to vector<1x128xf32>
    %58 = vector.broadcast %57 : vector<1x128xf32> to vector<128x128xf32>
    %59 = arith.addf %55, %58 : vector<128x128xf32>
    %60 = tpu.iota {dimensions = array<i32: 1>} : vector<128x128xi32>
    %c8_i32 = arith.constant 8 : i32
    %61 = vector.broadcast %c8_i32 : i32 to vector<128x128xi32>
    %62 = arith.cmpi slt, %60, %61 : vector<128x128xi32>
    %cst_34 = arith.constant -1.000000e+30 : f32
    %63 = vector.broadcast %cst_34 : f32 to vector<128x128xf32>
    %64 = arith.select %62, %59, %63 : vector<128x128xi1>, vector<128x128xf32>
    %cst_35 = arith.constant dense<0xFF800000> : vector<128xf32>
    %65 = vector.multi_reduction <maximumf>, %64, %cst_35 [1] : vector<128x128xf32> to vector<128xf32>
    %66 = vector.shape_cast %65 : vector<128xf32> to vector<128x1xf32>
    %67 = vector.broadcast %66 : vector<128x1xf32> to vector<128x128xf32>
    %68 = arith.subf %64, %67 : vector<128x128xf32>
    %69 = math.exp %68 : vector<128x128xf32>
    %cst_36 = arith.constant dense<0.000000e+00> : vector<128xf32>
    %70 = vector.multi_reduction <add>, %69, %cst_36 [1] : vector<128x128xf32> to vector<128xf32>
    %71 = vector.shape_cast %70 : vector<128xf32> to vector<128x1xf32>
    %72 = math.log %71 : vector<128x1xf32>
    %73 = vector.broadcast %72 : vector<128x1xf32> to vector<128x128xf32>
    %74 = arith.subf %68, %73 : vector<128x128xf32>
    %c0_37 = arith.constant 0 : index
    %c0_38 = arith.constant 0 : index
    %75 = vector.load %arg5[%c0_37, %c0_38] : memref<128x128xf32, #tpu.memory_space<vmem>>, vector<128x128xf32>
    tpu.vector_store %arg5[%c0_37, %c0_38], %74 {strides = array<i32>} : memref<128x128xf32, #tpu.memory_space<vmem>>, vector<128x128xf32>,
    return
  }
}

</mosaic_0001>

<llo_original>
// kernel: tpu_custom_call.1
$region0: #{tpu_custom_call.1}
  #allocation0 [shape = 'u32[]', space=smem, size = 0x4, offset = 0x4, fixed_abs, tag = 'smem constant byte address 0x4 - core index']
  #allocation1 [shape = 'u32[144,128]{1,0:T(1,128)}', space=vmem, size = 0x12000, scoped, tag = 'internal scratch']
  %s0 = inlined_call_operand.vmem [shape: bf16[128,128], index: 0, kind: input, shape index: {}]
  %s1 = inlined_call_operand.vmem [shape: f32[128,1], index: 1, kind: input, shape index: {}]
  %s2 = inlined_call_operand.vmem [shape: bf16[128,128], index: 2, kind: input, shape index: {}]
  %s3 = inlined_call_operand.hbm [shape: bf16[3,2,128,128], index: 3, kind: input, shape index: {}]
  %s4 = inlined_call_operand.vmem [shape: f32[3,1,128], index: 4, kind: input, shape index: {}]
  %s5 = inlined_call_operand.hbm [shape: f32[128,128], index: 5, kind: output, shape index: {}]
  %s6 = sld [smem:[#allocation0]]
  $region34: #{tpu_custom_call.1} parent=0
    _
  %s8 = ssub.s32 1, %s6
  %s9 = scalar_select 0, %s8, %s6
  $region1: #{tpu_custom_call.1} parent=0
    #allocation2 [shape = 'u8[196608]{0}', space=vmem, size = 0x30000, scoped, tag = 'input window, operand 3, single buffered']
    #allocation3 [shape = 's32[1]{0}', space=sflag, size = 0x4, scoped, tag = 'scoped memory for tpu_custom_call.1']
    #allocation4 [shape = 's32[1]{0}', space=sflag, size = 0x4, scoped, tag = 'scoped memory for tpu_custom_call.1']
    #allocation5 [shape = 'u8[65536]{0}', space=vmem, size = 0x10000, scoped, tag = 'output window, operand 0, single buffered']
    %10 = vsyncpa [#allocation3], 0
    %11 = vsyncpa [#allocation4], 0
    // Predicated region
    $region2: #{tpu_custom_call.1} parent=1 // pred_check
      _
    $region3: #{tpu_custom_call.1} parent=1 // pred_check_branch
      %13 = sbr.rel (0) target = $region5
    $region4: #{tpu_custom_call.1} parent=1 // pred_region
      _
    $region5: #{tpu_custom_call.1} parent=1 // pred_fallthru
      _
    // Predicated region
    $region6: #{tpu_custom_call.1} parent=1 // pred_check
      _
    $region7: #{tpu_custom_call.1} parent=1 // pred_check_branch
      %15 = sbr.rel (0) target = $region9
    $region8: #{tpu_custom_call.1} parent=1 // pred_region
      _
    $region9: #{tpu_custom_call.1} parent=1 // pred_fallthru
      _
    // Predicated region
    $region10: #{tpu_custom_call.1} parent=1 // pred_check
      _
    $region11: #{tpu_custom_call.1} parent=1 // pred_check_branch
      %17 = sbr.rel (0) target = $region13
    $region12: #{tpu_custom_call.1} parent=1 // pred_region
      _
    $region13: #{tpu_custom_call.1} parent=1 // pred_fallthru
      _
    // Predicated region
    $region14: #{tpu_custom_call.1} parent=1 // pred_check
      _
    $region15: #{tpu_custom_call.1} parent=1 // pred_check_branch
      %19 = sbr.rel (0) target = $region17
    $region16: #{tpu_custom_call.1} parent=1 // pred_region
      %s21 = ssub.s32 6144, 6144
      %22 = vsyncadd [#allocation3], %s21
      %s23 = sshll.u32 [#allocation2], 4
      %s24 = int_to_ptr.vmem [resolvable:$true] %s23
      %29 = dma.hbm_to_vmem [thread:$0]  %s3, 6144, %s24, [#allocation3], 64, 64, 4
    $region17: #{tpu_custom_call.1} parent=1 // pred_fallthru
      _
    // Predicated region
    $region18: #{tpu_custom_call.1} parent=1 // pred_check
      _
    $region19: #{tpu_custom_call.1} parent=1 // pred_check_branch
      %31 = sbr.rel (0) target = $region21
    $region20: #{tpu_custom_call.1} parent=1 // pred_region
      _
    $region21: #{tpu_custom_call.1} parent=1 // pred_fallthru
      _
    // Predicated region
    $region22: #{tpu_custom_call.1} parent=1 // pred_check
      _
    $region23: #{tpu_custom_call.1} parent=1 // pred_check_branch
      %33 = sbr.rel (0) target = $region25
    $region24: #{tpu_custom_call.1} parent=1 // pred_region
      %34 = dma.done [#allocation3], 6144
    $region25: #{tpu_custom_call.1} parent=1 // pred_fallthru
      _
    %v36 = vld [vmem:[%s0] sm:$0xf]
    %v37 = vld [vmem:[%s0 + $0x4] sm:$0xf]
    %v38 = vld [vmem:[%s0 + $0x8] sm:$0xf]
    %v39 = vld [vmem:[%s0 + $0xc] sm:$0xf]
    %v40 = vld [vmem:[%s0 + $0x10] sm:$0xf]
    %v41 = vld [vmem:[%s0 + $0x14] sm:$0xf]
    %v42 = vld [vmem:[%s0 + $0x18] sm:$0xf]
    %v43 = vld [vmem:[%s0 + $0x1c] sm:$0xf]
    %v44 = vld [vmem:[%s0 + $0x20] sm:$0xf]
    %v45 = vld [vmem:[%s0 + $0x24] sm:$0xf]
    %v46 = vld [vmem:[%s0 + $0x28] sm:$0xf]
    %v47 = vld [vmem:[%s0 + $0x2c] sm:$0xf]
    %v48 = vld [vmem:[%s0 + $0x30] sm:$0xf]
    %v49 = vld [vmem:[%s0 + $0x34] sm:$0xf]
    %v50 = vld [vmem:[%s0 + $0x38] sm:$0xf]
    %v51 = vld [vmem:[%s0 + $0x3c] sm:$0xf]
    %v52 = vld [vmem:[%s1] sm:$0xff]
    %v53 = vld [vmem:[%s1 + $0x8] sm:$0xff]
    %v54 = vld [vmem:[%s1 + $0x10] sm:$0xff]
    %v55 = vld [vmem:[%s1 + $0x18] sm:$0xff]
    %v56 = vld [vmem:[%s1 + $0x20] sm:$0xff]
    %v57 = vld [vmem:[%s1 + $0x28] sm:$0xff]
    %v58 = vld [vmem:[%s1 + $0x30] sm:$0xff]
    %v59 = vld [vmem:[%s1 + $0x38] sm:$0xff]
    %v60 = vld [vmem:[%s1 + $0x40] sm:$0xff]
    %v61 = vld [vmem:[%s1 + $0x48] sm:$0xff]
    %v62 = vld [vmem:[%s1 + $0x50] sm:$0xff]
    %v63 = vld [vmem:[%s1 + $0x58] sm:$0xff]
    %v64 = vld [vmem:[%s1 + $0x60] sm:$0xff]
    %v65 = vld [vmem:[%s1 + $0x68] sm:$0xff]
    %v66 = vld [vmem:[%s1 + $0x70] sm:$0xff]
    %v67 = vld [vmem:[%s1 + $0x78] sm:$0xff]
    %v68 = vld [vmem:[%s2] sm:$0xf]
    %v69 = vld [vmem:[%s2 + $0x4] sm:$0xf]
    %v70 = vld [vmem:[%s2 + $0x8] sm:$0xf]
    %v71 = vld [vmem:[%s2 + $0xc] sm:$0xf]
    %v72 = vld [vmem:[%s2 + $0x10] sm:$0xf]
    %v73 = vld [vmem:[%s2 + $0x14] sm:$0xf]
    %v74 = vld [vmem:[%s2 + $0x18] sm:$0xf]
    %v75 = vld [vmem:[%s2 + $0x1c] sm:$0xf]
    %v76 = vld [vmem:[%s2 + $0x20] sm:$0xf]
    %v77 = vld [vmem:[%s2 + $0x24] sm:$0xf]
    %v78 = vld [vmem:[%s2 + $0x28] sm:$0xf]
    %v79 = vld [vmem:[%s2 + $0x2c] sm:$0xf]
    %v80 = vld [vmem:[%s2 + $0x30] sm:$0xf]
    %v81 = vld [vmem:[%s2 + $0x34] sm:$0xf]
    %v82 = vld [vmem:[%s2 + $0x38] sm:$0xf]
    %v83 = vld [vmem:[%s2 + $0x3c] sm:$0xf]
    %v84 = vld [vmem:[#allocation2] sm:$0xf]
    %v85 = vld [vmem:[#allocation2 + $0x4] sm:$0xf]
    %v86 = vld [vmem:[#allocation2 + $0x8] sm:$0xf]
    %v87 = vld [vmem:[#allocation2 + $0xc] sm:$0xf]
    %v88 = vld [vmem:[#allocation2 + $0x10] sm:$0xf]
    %v89 = vld [vmem:[#allocation2 + $0x14] sm:$0xf]
    %v90 = vld [vmem:[#allocation2 + $0x18] sm:$0xf]
    %v91 = vld [vmem:[#allocation2 + $0x1c] sm:$0xf]
    %v92 = vld [vmem:[#allocation2 + $0x20] sm:$0xf]
    %v93 = vld [vmem:[#allocation2 + $0x24] sm:$0xf]
    %v94 = vld [vmem:[#allocation2 + $0x28] sm:$0xf]
    %v95 = vld [vmem:[#allocation2 + $0x2c] sm:$0xf]
    %v96 = vld [vmem:[#allocation2 + $0x30] sm:$0xf]
    %v97 = vld [vmem:[#allocation2 + $0x34] sm:$0xf]
    %v98 = vld [vmem:[#allocation2 + $0x38] sm:$0xf]
    %v99 = vld [vmem:[#allocation2 + $0x3c] sm:$0xf]
    %v100 = vld [vmem:[#allocation2 + $0x40] sm:$0xf]
    %v101 = vld [vmem:[#allocation2 + $0x44] sm:$0xf]
    %v102 = vld [vmem:[#allocation2 + $0x48] sm:$0xf]
    %v103 = vld [vmem:[#allocation2 + $0x4c] sm:$0xf]
    %v104 = vld [vmem:[#allocation2 + $0x50] sm:$0xf]
    %v105 = vld [vmem:[#allocation2 + $0x54] sm:$0xf]
    %v106 = vld [vmem:[#allocation2 + $0x58] sm:$0xf]
    %v107 = vld [vmem:[#allocation2 + $0x5c] sm:$0xf]
    %v108 = vld [vmem:[#allocation2 + $0x60] sm:$0xf]
    %v109 = vld [vmem:[#allocation2 + $0x64] sm:$0xf]
    %v110 = vld [vmem:[#allocation2 + $0x68] sm:$0xf]
    %v111 = vld [vmem:[#allocation2 + $0x6c] sm:$0xf]
    %v112 = vld [vmem:[#allocation2 + $0x70] sm:$0xf]
    %v113 = vld [vmem:[#allocation2 + $0x74] sm:$0xf]
    %v114 = vld [vmem:[#allocation2 + $0x78] sm:$0xf]
    %v115 = vld [vmem:[#allocation2 + $0x7c] sm:$0xf]
    %v132 = vunpack.c.l.b16 %v68
    %v133 = vunpack.c.l.b16 %v69
    %v134 = vunpack.c.l.b16 %v70
    %v135 = vunpack.c.l.b16 %v71
    %v136 = vunpack.c.l.b16 %v72
    %v137 = vunpack.c.l.b16 %v73
    %v138 = vunpack.c.l.b16 %v74
    %v139 = vunpack.c.l.b16 %v75
    %v140 = vunpack.c.l.b16 %v76
    %v141 = vunpack.c.l.b16 %v77
    %v142 = vunpack.c.l.b16 %v78
    %v143 = vunpack.c.l.b16 %v79
    %v144 = vunpack.c.l.b16 %v80
    %v145 = vunpack.c.l.b16 %v81
    %v146 = vunpack.c.l.b16 %v82
    %v147 = vunpack.c.l.b16 %v83
    %v148 = vpack.c.b16 %v133, %v132
    %v149 = vpack.c.b16 %v135, %v134
    %v150 = vpack.c.b16 %v137, %v136
    %v151 = vpack.c.b16 %v139, %v138
    %v152 = vpack.c.b16 %v141, %v140
    %v153 = vpack.c.b16 %v143, %v142
    %v154 = vpack.c.b16 %v145, %v144
    %v155 = vpack.c.b16 %v147, %v146
    %v180 = vunpack.c.l.b16 %v84
    %v181 = vunpack.c.l.b16 %v85
    %v182 = vunpack.c.l.b16 %v86
    %v183 = vunpack.c.l.b16 %v87
    %v184 = vunpack.c.l.b16 %v88
    %v185 = vunpack.c.l.b16 %v89
    %v186 = vunpack.c.l.b16 %v90
    %v187 = vunpack.c.l.b16 %v91
    %v188 = vunpack.c.l.b16 %v92
    %v189 = vunpack.c.l.b16 %v93
    %v190 = vunpack.c.l.b16 %v94
    %v191 = vunpack.c.l.b16 %v95
    %v192 = vunpack.c.l.b16 %v96
    %v193 = vunpack.c.l.b16 %v97
    %v194 = vunpack.c.l.b16 %v98
    %v195 = vunpack.c.l.b16 %v99
    %v196 = vpack.c.b16 %v181, %v180
    %v197 = vpack.c.b16 %v183, %v182
    %v198 = vpack.c.b16 %v185, %v184
    %v199 = vpack.c.b16 %v187, %v186
    %v200 = vpack.c.b16 %v189, %v188
    %v201 = vpack.c.b16 %v191, %v190
    %v202 = vpack.c.b16 %v193, %v192
    %v203 = vpack.c.b16 %v195, %v194
    %212 = vmatprep.subr.bf16.mxu0 0
    %213 = vmatpush1.bf16.msra.mxu0 %v196
    %214 = vmatprep.subr.bf16.mxu0 0
    %215 = vmatpush1.bf16.msra.mxu0 %v197
    %216 = vmatprep.subr.bf16.mxu0 0
    %217 = vmatpush1.bf16.msra.mxu0 %v198
    %218 = vmatprep.subr.bf16.mxu0 0
    %219 = vmatpush1.bf16.msra.mxu0 %v199
    %220 = vmatprep.subr.bf16.mxu0 0
    %221 = vmatpush1.bf16.msra.mxu0 %v200
    %222 = vmatprep.subr.bf16.mxu0 0
    %223 = vmatpush1.bf16.msra.mxu0 %v201
    %224 = vmatprep.subr.bf16.mxu0 0
    %225 = vmatpush1.bf16.msra.mxu0 %v202
    %226 = vmatprep.subr.bf16.mxu0 0
    %227 = vmatpush1.bf16.msra.mxu0 %v203
    %228 = vmatprep.subr.bf16.mxu0 0
    %229 = vmatpush1.bf16.msra.mxu0 0
    %230 = vmatprep.subr.bf16.mxu0 0
    %231 = vmatpush1.bf16.msra.mxu0 0
    %232 = vmatprep.subr.bf16.mxu0 0
    %233 = vmatpush1.bf16.msra.mxu0 0
    %234 = vmatprep.subr.bf16.mxu0 0
    %235 = vmatpush1.bf16.msra.mxu0 0
    %236 = vmatprep.subr.bf16.mxu0 0
    %237 = vmatpush1.bf16.msra.mxu0 0
    %238 = vmatprep.subr.bf16.mxu0 0
    %239 = vmatpush1.bf16.msra.mxu0 0
    %240 = vmatprep.subr.bf16.mxu0 0
    %241 = vmatpush1.bf16.msra.mxu0 0
    %242 = vmatprep.subr.bf16.mxu0 0
    %243 = vmatpush1.bf16.msra.mxu0 0
    %244 = vmatprep.mubr.bf16.mxu0 0
    %245 = vmatmul.mubr.bf16.gmra.mrb[0].mxu0 %v148
    %v246 = vpop.f32.mrb[0].mxu0
    %v247 = vadd.f32 0.0, %v246
    %v248 = vpop.f32.mrb[0].mxu0
    %v249 = vpop.f32.mrb[0].mxu0
    %v250 = vadd.f32 0.0, %v249
    %v251 = vpop.f32.mrb[0].mxu0
    %252 = vmatprep.mubr.bf16.mxu0 0
    %253 = vmatmul.mubr.bf16.gmra.mrb[0].mxu0 %v149
    %v254 = vpop.f32.mrb[0].mxu0
    %v255 = vadd.f32 0.0, %v254
    %v256 = vpop.f32.mrb[0].mxu0
    %v257 = vpop.f32.mrb[0].mxu0
    %v258 = vadd.f32 0.0, %v257
    %v259 = vpop.f32.mrb[0].mxu0
    %260 = vmatprep.mubr.bf16.mxu0 0
    %261 = vmatmul.mubr.bf16.gmra.mrb[0].mxu0 %v150
    %v262 = vpop.f32.mrb[0].mxu0
    %v263 = vadd.f32 0.0, %v262
    %v264 = vpop.f32.mrb[0].mxu0
    %v265 = vpop.f32.mrb[0].mxu0
    %v266 = vadd.f32 0.0, %v265
    %v267 = vpop.f32.mrb[0].mxu0
    %268 = vmatprep.mubr.bf16.mxu0 0
    %269 = vmatmul.mubr.bf16.gmra.mrb[0].mxu0 %v151
    %v270 = vpop.f32.mrb[0].mxu0
    %v271 = vadd.f32 0.0, %v270
    %v272 = vpop.f32.mrb[0].mxu0
    %v273 = vpop.f32.mrb[0].mxu0
    %v274 = vadd.f32 0.0, %v273
    %v275 = vpop.f32.mrb[0].mxu0
    %276 = vmatprep.mubr.bf16.mxu0 0
    %277 = vmatmul.mubr.bf16.gmra.mrb[0].mxu0 %v152
    %v278 = vpop.f32.mrb[0].mxu0
    %v279 = vadd.f32 0.0, %v278
    %v280 = vpop.f32.mrb[0].mxu0
    %v281 = vpop.f32.mrb[0].mxu0
    %v282 = vadd.f32 0.0, %v281
    %v283 = vpop.f32.mrb[0].mxu0
    %284 = vmatprep.mubr.bf16.mxu0 0
    %285 = vmatmul.mubr.bf16.gmra.mrb[0].mxu0 %v153
    %v286 = vpop.f32.mrb[0].mxu0
    %v287 = vadd.f32 0.0, %v286
    %v288 = vpop.f32.mrb[0].mxu0
    %v289 = vpop.f32.mrb[0].mxu0
    %v290 = vadd.f32 0.0, %v289
    %v291 = vpop.f32.mrb[0].mxu0
    %292 = vmatprep.mubr.bf16.mxu0 0
    %293 = vmatmul.mubr.bf16.gmra.mrb[0].mxu0 %v154
    %v294 = vpop.f32.mrb[0].mxu0
    %v295 = vadd.f32 0.0, %v294
    %v296 = vpop.f32.mrb[0].mxu0
    %v297 = vpop.f32.mrb[0].mxu0
    %v298 = vadd.f32 0.0, %v297
    %v299 = vpop.f32.mrb[0].mxu0
    %300 = vmatprep.mubr.bf16.mxu0 0
    %301 = vmatmul.mubr.bf16.gmra.mrb[0].mxu0 %v155
    %v302 = vpop.f32.mrb[0].mxu0
    %v303 = vadd.f32 0.0, %v302
    %v304 = vpop.f32.mrb[0].mxu0
    %v305 = vpop.f32.mrb[0].mxu0
    %v306 = vadd.f32 0.0, %v305
    %v307 = vpop.f32.mrb[0].mxu0
    %308 = vdwg.mxu0
    %v325 = vunpack.c.l.b16 %v100
    %v326 = vunpack.c.l.b16 %v101
    %v327 = vunpack.c.l.b16 %v102
    %v328 = vunpack.c.l.b16 %v103
    %v329 = vunpack.c.l.b16 %v104
    %v330 = vunpack.c.l.b16 %v105
    %v331 = vunpack.c.l.b16 %v106
    %v332 = vunpack.c.l.b16 %v107
    %v333 = vunpack.c.l.b16 %v108
    %v334 = vunpack.c.l.b16 %v109
    %v335 = vunpack.c.l.b16 %v110
    %v336 = vunpack.c.l.b16 %v111
    %v337 = vunpack.c.l.b16 %v112
    %v338 = vunpack.c.l.b16 %v113
    %v339 = vunpack.c.l.b16 %v114
    %v340 = vunpack.c.l.b16 %v115
    %v341 = vpack.c.b16 %v326, %v325
    %v342 = vpack.c.b16 %v328, %v327
    %v343 = vpack.c.b16 %v330, %v329
    %v344 = vpack.c.b16 %v332, %v331
    %v345 = vpack.c.b16 %v334, %v333
    %v346 = vpack.c.b16 %v336, %v335
    %v347 = vpack.c.b16 %v338, %v337
    %v348 = vpack.c.b16 %v340, %v339
    %357 = vmatprep.subr.bf16.mxu0 0
    %358 = vmatpush1.bf16.msra.mxu0 %v341
    %359 = vmatprep.subr.bf16.mxu0 0
    %360 = vmatpush1.bf16.msra.mxu0 %v342
    %361 = vmatprep.subr.bf16.mxu0 0
    %362 = vmatpush1.bf16.msra.mxu0 %v343
    %363 = vmatprep.subr.bf16.mxu0 0
    %364 = vmatpush1.bf16.msra.mxu0 %v344
    %365 = vmatprep.subr.bf16.mxu0 0
    %366 = vmatpush1.bf16.msra.mxu0 %v345
    %367 = vmatprep.subr.bf16.mxu0 0
    %368 = vmatpush1.bf16.msra.mxu0 %v346
    %369 = vmatprep.subr.bf16.mxu0 0
    %370 = vmatpush1.bf16.msra.mxu0 %v347
    %371 = vmatprep.subr.bf16.mxu0 0
    %372 = vmatpush1.bf16.msra.mxu0 %v348
    %373 = vmatprep.subr.bf16.mxu0 0
    %374 = vmatpush1.bf16.msra.mxu0 0
    %375 = vmatprep.subr.bf16.mxu0 0
    %376 = vmatpush1.bf16.msra.mxu0 0
    %377 = vmatprep.subr.bf16.mxu0 0
    %378 = vmatpush1.bf16.msra.mxu0 0
    %379 = vmatprep.subr.bf16.mxu0 0
    %380 = vmatpush1.bf16.msra.mxu0 0
    %381 = vmatprep.subr.bf16.mxu0 0
    %382 = vmatpush1.bf16.msra.mxu0 0
    %383 = vmatprep.subr.bf16.mxu0 0
    %384 = vmatpush1.bf16.msra.mxu0 0
    %385 = vmatprep.subr.bf16.mxu0 0
    %386 = vmatpush1.bf16.msra.mxu0 0
    %387 = vmatprep.subr.bf16.mxu0 0
    %388 = vmatpush1.bf16.msra.mxu0 0
    %389 = vmatprep.mubr.bf16.mxu0 0
    %390 = vmatmul.mubr.bf16.gmra.mrb[0].mxu0 %v148
    %v391 = vpop.f32.mrb[0].mxu0
    %v392 = vadd.f32 0.0, %v391
    %v393 = vpop.f32.mrb[0].mxu0
    %v394 = vpop.f32.mrb[0].mxu0
    %v395 = vadd.f32 0.0, %v394
    %v396 = vpop.f32.mrb[0].mxu0
    %397 = vmatprep.mubr.bf16.mxu0 0
    %398 = vmatmul.mubr.bf16.gmra.mrb[0].mxu0 %v149
    %v399 = vpop.f32.mrb[0].mxu0
    %v400 = vadd.f32 0.0, %v399
    %v401 = vpop.f32.mrb[0].mxu0
    %v402 = vpop.f32.mrb[0].mxu0
    %v403 = vadd.f32 0.0, %v402
    %v404 = vpop.f32.mrb[0].mxu0
    %405 = vmatprep.mubr.bf16.mxu0 0
    %406 = vmatmul.mubr.bf16.gmra.mrb[0].mxu0 %v150
    %v407 = vpop.f32.mrb[0].mxu0
    %v408 = vadd.f32 0.0, %v407
    %v409 = vpop.f32.mrb[0].mxu0
    %v410 = vpop.f32.mrb[0].mxu0
    %v411 = vadd.f32 0.0, %v410
    %v412 = vpop.f32.mrb[0].mxu0
    %413 = vmatprep.mubr.bf16.mxu0 0
    %414 = vmatmul.mubr.bf16.gmra.mrb[0].mxu0 %v151
    %v415 = vpop.f32.mrb[0].mxu0
    %v416 = vadd.f32 0.0, %v415
    %v417 = vpop.f32.mrb[0].mxu0
    %v418 = vpop.f32.mrb[0].mxu0
    %v419 = vadd.f32 0.0, %v418
    %v420 = vpop.f32.mrb[0].mxu0
    %421 = vmatprep.mubr.bf16.mxu0 0
    %422 = vmatmul.mubr.bf16.gmra.mrb[0].mxu0 %v152
    %v423 = vpop.f32.mrb[0].mxu0
    %v424 = vadd.f32 0.0, %v423
    %v425 = vpop.f32.mrb[0].mxu0
    %v426 = vpop.f32.mrb[0].mxu0
    %v427 = vadd.f32 0.0, %v426
    %v428 = vpop.f32.mrb[0].mxu0
    %429 = vmatprep.mubr.bf16.mxu0 0
    %430 = vmatmul.mubr.bf16.gmra.mrb[0].mxu0 %v153
    %v431 = vpop.f32.mrb[0].mxu0
    %v432 = vadd.f32 0.0, %v431
    %v433 = vpop.f32.mrb[0].mxu0
    %v434 = vpop.f32.mrb[0].mxu0
    %v435 = vadd.f32 0.0, %v434
    %v436 = vpop.f32.mrb[0].mxu0
    %437 = vmatprep.mubr.bf16.mxu0 0
    %438 = vmatmul.mubr.bf16.gmra.mrb[0].mxu0 %v154
    %v439 = vpop.f32.mrb[0].mxu0
    %v440 = vadd.f32 0.0, %v439
    %v441 = vpop.f32.mrb[0].mxu0
    %v442 = vpop.f32.mrb[0].mxu0
    %v443 = vadd.f32 0.0, %v442
    %v444 = vpop.f32.mrb[0].mxu0
    %445 = vmatprep.mubr.bf16.mxu0 0
    %446 = vmatmul.mubr.bf16.gmra.mrb[0].mxu0 %v155
    %v447 = vpop.f32.mrb[0].mxu0
    %v448 = vadd.f32 0.0, %v447
    %v449 = vpop.f32.mrb[0].mxu0
    %v450 = vpop.f32.mrb[0].mxu0
    %v451 = vadd.f32 0.0, %v450
    %v452 = vpop.f32.mrb[0].mxu0
    %453 = vdwg.mxu0
    %v454 = vpack.c.bf16 %v250, %v247
    %v455 = vpack.c.bf16 %v258, %v255
    %v456 = vpack.c.bf16 %v266, %v263
    %v457 = vpack.c.bf16 %v274, %v271
    %v458 = vpack.c.bf16 %v282, %v279
    %v459 = vpack.c.bf16 %v290, %v287
    %v460 = vpack.c.bf16 %v298, %v295
    %v461 = vpack.c.bf16 %v306, %v303
    %v478 = vunpack.c.l.b16 %v36
    %v479 = vunpack.c.l.b16 %v37
    %v480 = vunpack.c.l.b16 %v38
    %v481 = vunpack.c.l.b16 %v39
    %v482 = vunpack.c.l.b16 %v40
    %v483 = vunpack.c.l.b16 %v41
    %v484 = vunpack.c.l.b16 %v42
    %v485 = vunpack.c.l.b16 %v43
    %v486 = vunpack.c.l.b16 %v44
    %v487 = vunpack.c.l.b16 %v45
    %v488 = vunpack.c.l.b16 %v46
    %v489 = vunpack.c.l.b16 %v47
    %v490 = vunpack.c.l.b16 %v48
    %v491 = vunpack.c.l.b16 %v49
    %v492 = vunpack.c.l.b16 %v50
    %v493 = vunpack.c.l.b16 %v51
    %v494 = vpack.c.b16 %v479, %v478
    %v495 = vpack.c.b16 %v481, %v480
    %v496 = vpack.c.b16 %v483, %v482
    %v497 = vpack.c.b16 %v485, %v484
    %v498 = vpack.c.b16 %v487, %v486
    %v499 = vpack.c.b16 %v489, %v488
    %v500 = vpack.c.b16 %v491, %v490
    %v501 = vpack.c.b16 %v493, %v492
    %510 = vmatprep.subr.bf16.mxu0 0
    %511 = vmatpush1.bf16.msra.mxu0 %v454
    %512 = vmatprep.subr.bf16.mxu0 0
    %513 = vmatpush1.bf16.msra.mxu0 %v455
    %514 = vmatprep.subr.bf16.mxu0 0
    %515 = vmatpush1.bf16.msra.mxu0 %v456
    %516 = vmatprep.subr.bf16.mxu0 0
    %517 = vmatpush1.bf16.msra.mxu0 %v457
    %518 = vmatprep.subr.bf16.mxu0 0
    %519 = vmatpush1.bf16.msra.mxu0 %v458
    %520 = vmatprep.subr.bf16.mxu0 0
    %521 = vmatpush1.bf16.msra.mxu0 %v459
    %522 = vmatprep.subr.bf16.mxu0 0
    %523 = vmatpush1.bf16.msra.mxu0 %v460
    %524 = vmatprep.subr.bf16.mxu0 0
    %525 = vmatpush1.bf16.msra.mxu0 %v461
    %526 = vmatprep.subr.bf16.mxu0 0
    %527 = vmatpush1.bf16.msra.mxu0 0
    %528 = vmatprep.subr.bf16.mxu0 0
    %529 = vmatpush1.bf16.msra.mxu0 0
    %530 = vmatprep.subr.bf16.mxu0 0
    %531 = vmatpush1.bf16.msra.mxu0 0
    %532 = vmatprep.subr.bf16.mxu0 0
    %533 = vmatpush1.bf16.msra.mxu0 0
    %534 = vmatprep.subr.bf16.mxu0 0
    %535 = vmatpush1.bf16.msra.mxu0 0
    %536 = vmatprep.subr.bf16.mxu0 0
    %537 = vmatpush1.bf16.msra.mxu0 0
    %538 = vmatprep.subr.bf16.mxu0 0
    %539 = vmatpush1.bf16.msra.mxu0 0
    %540 = vmatprep.subr.bf16.mxu0 0
    %541 = vmatpush1.bf16.msra.mxu0 0
    %542 = vmatprep.mubr.bf16.mxu0 0
    %543 = vmatmul.mubr.bf16.gmra.mrb[0].mxu0 %v494
    %v544 = vpop.f32.mrb[0].mxu0
    %v545 = vadd.f32 0.0, %v544
    %v546 = vpop.f32.mrb[0].mxu0
    %v547 = vpop.f32.mrb[0].mxu0
    %v548 = vadd.f32 0.0, %v547
    %v549 = vpop.f32.mrb[0].mxu0
    %550 = vmatprep.mubr.bf16.mxu0 0
    %551 = vmatmul.mubr.bf16.gmra.mrb[0].mxu0 %v495
    %v552 = vpop.f32.mrb[0].mxu0
    %v553 = vadd.f32 0.0, %v552
    %v554 = vpop.f32.mrb[0].mxu0
    %v555 = vpop.f32.mrb[0].mxu0
    %v556 = vadd.f32 0.0, %v555
    %v557 = vpop.f32.mrb[0].mxu0
    %558 = vmatprep.mubr.bf16.mxu0 0
    %559 = vmatmul.mubr.bf16.gmra.mrb[0].mxu0 %v496
    %v560 = vpop.f32.mrb[0].mxu0
    %v561 = vadd.f32 0.0, %v560
    %v562 = vpop.f32.mrb[0].mxu0
    %v563 = vpop.f32.mrb[0].mxu0
    %v564 = vadd.f32 0.0, %v563
    %v565 = vpop.f32.mrb[0].mxu0
    %566 = vmatprep.mubr.bf16.mxu0 0
    %567 = vmatmul.mubr.bf16.gmra.mrb[0].mxu0 %v497
    %v568 = vpop.f32.mrb[0].mxu0
    %v569 = vadd.f32 0.0, %v568
    %v570 = vpop.f32.mrb[0].mxu0
    %v571 = vpop.f32.mrb[0].mxu0
    %v572 = vadd.f32 0.0, %v571
    %v573 = vpop.f32.mrb[0].mxu0
    %574 = vmatprep.mubr.bf16.mxu0 0
    %575 = vmatmul.mubr.bf16.gmra.mrb[0].mxu0 %v498
    %v576 = vpop.f32.mrb[0].mxu0
    %v577 = vadd.f32 0.0, %v576
    %v578 = vpop.f32.mrb[0].mxu0
    %v579 = vpop.f32.mrb[0].mxu0
    %v580 = vadd.f32 0.0, %v579
    %v581 = vpop.f32.mrb[0].mxu0
    %582 = vmatprep.mubr.bf16.mxu0 0
    %583 = vmatmul.mubr.bf16.gmra.mrb[0].mxu0 %v499
    %v584 = vpop.f32.mrb[0].mxu0
    %v585 = vadd.f32 0.0, %v584
    %v586 = vpop.f32.mrb[0].mxu0
    %v587 = vpop.f32.mrb[0].mxu0
    %v588 = vadd.f32 0.0, %v587
    %v589 = vpop.f32.mrb[0].mxu0
    %590 = vmatprep.mubr.bf16.mxu0 0
    %591 = vmatmul.mubr.bf16.gmra.mrb[0].mxu0 %v500
    %v592 = vpop.f32.mrb[0].mxu0
    %v593 = vadd.f32 0.0, %v592
    %v594 = vpop.f32.mrb[0].mxu0
    %v595 = vpop.f32.mrb[0].mxu0
    %v596 = vadd.f32 0.0, %v595
    %v597 = vpop.f32.mrb[0].mxu0
    %598 = vmatprep.mubr.bf16.mxu0 0
    %599 = vmatmul.mubr.bf16.gmra.mrb[0].mxu0 %v501
    %v600 = vpop.f32.mrb[0].mxu0
    %v601 = vadd.f32 0.0, %v600
    %v602 = vpop.f32.mrb[0].mxu0
    %v603 = vpop.f32.mrb[0].mxu0
    %v604 = vadd.f32 0.0, %v603
    %v605 = vpop.f32.mrb[0].mxu0
    %606 = vdwg.mxu0
    %608 = vset.pattern.permute.xlu0 0
    %609 = vperm.xlu0 %608, %v52
    %v610 = vpop.permute.xlu0 %609
    %613 = vset.pattern.permute.xlu0 0
    %614 = vperm.xlu0 %613, %v53
    %v615 = vpop.permute.xlu0 %614
    %618 = vset.pattern.permute.xlu0 0
    %619 = vperm.xlu0 %618, %v54
    %v620 = vpop.permute.xlu0 %619
    %623 = vset.pattern.permute.xlu0 0
    %624 = vperm.xlu0 %623, %v55
    %v625 = vpop.permute.xlu0 %624
    %628 = vset.pattern.permute.xlu0 0
    %629 = vperm.xlu0 %628, %v56
    %v630 = vpop.permute.xlu0 %629
    %633 = vset.pattern.permute.xlu0 0
    %634 = vperm.xlu0 %633, %v57
    %v635 = vpop.permute.xlu0 %634
    %638 = vset.pattern.permute.xlu0 0
    %639 = vperm.xlu0 %638, %v58
    %v640 = vpop.permute.xlu0 %639
    %643 = vset.pattern.permute.xlu0 0
    %644 = vperm.xlu0 %643, %v59
    %v645 = vpop.permute.xlu0 %644
    %648 = vset.pattern.permute.xlu0 0
    %649 = vperm.xlu0 %648, %v60
    %v650 = vpop.permute.xlu0 %649
    %653 = vset.pattern.permute.xlu0 0
    %654 = vperm.xlu0 %653, %v61
    %v655 = vpop.permute.xlu0 %654
    %658 = vset.pattern.permute.xlu0 0
    %659 = vperm.xlu0 %658, %v62
    %v660 = vpop.permute.xlu0 %659
    %663 = vset.pattern.permute.xlu0 0
    %664 = vperm.xlu0 %663, %v63
    %v665 = vpop.permute.xlu0 %664
    %668 = vset.pattern.permute.xlu0 0
    %669 = vperm.xlu0 %668, %v64
    %v670 = vpop.permute.xlu0 %669
    %673 = vset.pattern.permute.xlu0 0
    %674 = vperm.xlu0 %673, %v65
    %v675 = vpop.permute.xlu0 %674
    %678 = vset.pattern.permute.xlu0 0
    %679 = vperm.xlu0 %678, %v66
    %v680 = vpop.permute.xlu0 %679
    %683 = vset.pattern.permute.xlu0 0
    %684 = vperm.xlu0 %683, %v67
    %v685 = vpop.permute.xlu0 %684
    %v687 = vmul.f32 %v610, %v545
    %v688 = vmul.f32 %v615, %v548
    %v689 = vmul.f32 %v620, %v553
    %v690 = vmul.f32 %v625, %v556
    %v691 = vmul.f32 %v630, %v561
    %v692 = vmul.f32 %v635, %v564
    %v693 = vmul.f32 %v640, %v569
    %v694 = vmul.f32 %v645, %v572
    %v695 = vmul.f32 %v650, %v577
    %v696 = vmul.f32 %v655, %v580
    %v697 = vmul.f32 %v660, %v585
    %v698 = vmul.f32 %v665, %v588
    %v699 = vmul.f32 %v670, %v593
    %v700 = vmul.f32 %v675, %v596
    %v701 = vmul.f32 %v680, %v601
    %v702 = vmul.f32 %v685, %v604
    %v703 = vadd.f32 %v687, %v392
    %v704 = vadd.f32 %v688, %v395
    %v705 = vadd.f32 %v689, %v400
    %v706 = vadd.f32 %v690, %v403
    %v707 = vadd.f32 %v691, %v408
    %v708 = vadd.f32 %v692, %v411
    %v709 = vadd.f32 %v693, %v416
    %v710 = vadd.f32 %v694, %v419
    %v711 = vadd.f32 %v695, %v424
    %v712 = vadd.f32 %v696, %v427
    %v713 = vadd.f32 %v697, %v432
    %v714 = vadd.f32 %v698, %v435
    %v715 = vadd.f32 %v699, %v440
    %v716 = vadd.f32 %v700, %v443
    %v717 = vadd.f32 %v701, %v448
    %v718 = vadd.f32 %v702, %v451
    %v719 = vld [vmem:[%s4] sm:$0x1]
    %v721 = vlaneseq
    %v722 = vshrl.u32 %v721, 7
    %v723 = vsub.s32 0, %v722
    %v724 = vrot.slane %v719, %v723
    %v726 = vadd.f32 %v703, %v724
    %v727 = vadd.f32 %v704, %v724
    %v728 = vadd.f32 %v705, %v724
    %v729 = vadd.f32 %v706, %v724
    %v730 = vadd.f32 %v707, %v724
    %v731 = vadd.f32 %v708, %v724
    %v732 = vadd.f32 %v709, %v724
    %v733 = vadd.f32 %v710, %v724
    %v734 = vadd.f32 %v711, %v724
    %v735 = vadd.f32 %v712, %v724
    %v736 = vadd.f32 %v713, %v724
    %v737 = vadd.f32 %v714, %v724
    %v738 = vadd.f32 %v715, %v724
    %v739 = vadd.f32 %v716, %v724
    %v740 = vadd.f32 %v717, %v724
    %v741 = vadd.f32 %v718, %v724
    %v742 = vmax.f32 %v726, 0.0
    %v743 = vmax.f32 %v727, 0.0
    %v744 = vmax.f32 %v728, 0.0
    %v745 = vmax.f32 %v729, 0.0
    %v746 = vmax.f32 %v730, 0.0
    %v747 = vmax.f32 %v731, 0.0
    %v748 = vmax.f32 %v732, 0.0
    %v749 = vmax.f32 %v733, 0.0
    %v750 = vmax.f32 %v734, 0.0
    %v751 = vmax.f32 %v735, 0.0
    %v752 = vmax.f32 %v736, 0.0
    %v753 = vmax.f32 %v737, 0.0
    %v754 = vmax.f32 %v738, 0.0
    %v755 = vmax.f32 %v739, 0.0
    %v756 = vmax.f32 %v740, 0.0
    %v757 = vmax.f32 %v741, 0.0
    %v758 = vpack.c.bf16 %v743, %v742
    %v759 = vpack.c.bf16 %v745, %v744
    %v760 = vpack.c.bf16 %v747, %v746
    %v761 = vpack.c.bf16 %v749, %v748
    %v762 = vpack.c.bf16 %v751, %v750
    %v763 = vpack.c.bf16 %v753, %v752
    %v764 = vpack.c.bf16 %v755, %v754
    %v765 = vpack.c.bf16 %v757, %v756
    %s766 = scalar_lea.vmem [#allocation2], 128
    %v767 = vld [vmem:[%s766] sm:$0xf]
    %v768 = vld [vmem:[%s766 + $0x4] sm:$0xf]
    %v769 = vld [vmem:[%s766 + $0x8] sm:$0xf]
    %v770 = vld [vmem:[%s766 + $0xc] sm:$0xf]
    %v771 = vld [vmem:[%s766 + $0x10] sm:$0xf]
    %v772 = vld [vmem:[%s766 + $0x14] sm:$0xf]
    %v773 = vld [vmem:[%s766 + $0x18] sm:$0xf]
    %v774 = vld [vmem:[%s766 + $0x1c] sm:$0xf]
    %v775 = vld [vmem:[%s766 + $0x20] sm:$0xf]
    %v776 = vld [vmem:[%s766 + $0x24] sm:$0xf]
    %v777 = vld [vmem:[%s766 + $0x28] sm:$0xf]
    %v778 = vld [vmem:[%s766 + $0x2c] sm:$0xf]
    %v779 = vld [vmem:[%s766 + $0x30] sm:$0xf]
    %v780 = vld [vmem:[%s766 + $0x34] sm:$0xf]
    %v781 = vld [vmem:[%s766 + $0x38] sm:$0xf]
    %v782 = vld [vmem:[%s766 + $0x3c] sm:$0xf]
    %v783 = vld [vmem:[%s766 + $0x40] sm:$0xf]
    %v784 = vld [vmem:[%s766 + $0x44] sm:$0xf]
    %v785 = vld [vmem:[%s766 + $0x48] sm:$0xf]
    %v786 = vld [vmem:[%s766 + $0x4c] sm:$0xf]
    %v787 = vld [vmem:[%s766 + $0x50] sm:$0xf]
    %v788 = vld [vmem:[%s766 + $0x54] sm:$0xf]
    %v789 = vld [vmem:[%s766 + $0x58] sm:$0xf]
    %v790 = vld [vmem:[%s766 + $0x5c] sm:$0xf]
    %v791 = vld [vmem:[%s766 + $0x60] sm:$0xf]
    %v792 = vld [vmem:[%s766 + $0x64] sm:$0xf]
    %v793 = vld [vmem:[%s766 + $0x68] sm:$0xf]
    %v794 = vld [vmem:[%s766 + $0x6c] sm:$0xf]
    %v795 = vld [vmem:[%s766 + $0x70] sm:$0xf]
    %v796 = vld [vmem:[%s766 + $0x74] sm:$0xf]
    %v797 = vld [vmem:[%s766 + $0x78] sm:$0xf]
    %v798 = vld [vmem:[%s766 + $0x7c] sm:$0xf]
    %v815 = vunpack.c.l.b16 %v767
    %v816 = vunpack.c.l.b16 %v768
    %v817 = vunpack.c.l.b16 %v769
    %v818 = vunpack.c.l.b16 %v770
    %v819 = vunpack.c.l.b16 %v771
    %v820 = vunpack.c.l.b16 %v772
    %v821 = vunpack.c.l.b16 %v773
    %v822 = vunpack.c.l.b16 %v774
    %v823 = vunpack.c.l.b16 %v775
    %v824 = vunpack.c.l.b16 %v776
    %v825 = vunpack.c.l.b16 %v777
    %v826 = vunpack.c.l.b16 %v778
    %v827 = vunpack.c.l.b16 %v779
    %v828 = vunpack.c.l.b16 %v780
    %v829 = vunpack.c.l.b16 %v781
    %v830 = vunpack.c.l.b16 %v782
    %v831 = vpack.c.b16 %v816, %v815
    %v832 = vpack.c.b16 %v818, %v817
    %v833 = vpack.c.b16 %v820, %v819
    %v834 = vpack.c.b16 %v822, %v821
    %v835 = vpack.c.b16 %v824, %v823
    %v836 = vpack.c.b16 %v826, %v825
    %v837 = vpack.c.b16 %v828, %v827
    %v838 = vpack.c.b16 %v830, %v829
    %847 = vmatprep.subr.bf16.mxu0 0
    %848 = vmatpush1.bf16.msra.mxu0 %v831
    %849 = vmatprep.subr.bf16.mxu0 0
    %850 = vmatpush1.bf16.msra.mxu0 %v832
    %851 = vmatprep.subr.bf16.mxu0 0
    %852 = vmatpush1.bf16.msra.mxu0 %v833
    %853 = vmatprep.subr.bf16.mxu0 0
    %854 = vmatpush1.bf16.msra.mxu0 %v834
    %855 = vmatprep.subr.bf16.mxu0 0
    %856 = vmatpush1.bf16.msra.mxu0 %v835
    %857 = vmatprep.subr.bf16.mxu0 0
    %858 = vmatpush1.bf16.msra.mxu0 %v836
    %859 = vmatprep.subr.bf16.mxu0 0
    %860 = vmatpush1.bf16.msra.mxu0 %v837
    %861 = vmatprep.subr.bf16.mxu0 0
    %862 = vmatpush1.bf16.msra.mxu0 %v838
    %863 = vmatprep.subr.bf16.mxu0 0
    %864 = vmatpush1.bf16.msra.mxu0 0
    %865 = vmatprep.subr.bf16.mxu0 0
    %866 = vmatpush1.bf16.msra.mxu0 0
    %867 = vmatprep.subr.bf16.mxu0 0
    %868 = vmatpush1.bf16.msra.mxu0 0
    %869 = vmatprep.subr.bf16.mxu0 0
    %870 = vmatpush1.bf16.msra.mxu0 0
    %871 = vmatprep.subr.bf16.mxu0 0
    %872 = vmatpush1.bf16.msra.mxu0 0
    %873 = vmatprep.subr.bf16.mxu0 0
    %874 = vmatpush1.bf16.msra.mxu0 0
    %875 = vmatprep.subr.bf16.mxu0 0
    %876 = vmatpush1.bf16.msra.mxu0 0
    %877 = vmatprep.subr.bf16.mxu0 0
    %878 = vmatpush1.bf16.msra.mxu0 0
    %879 = vmatprep.mubr.bf16.mxu0 0
    %880 = vmatmul.mubr.bf16.gmra.mrb[0].mxu0 %v758
    %v881 = vpop.f32.mrb[0].mxu0
    %v882 = vadd.f32 0.0, %v881
    %v883 = vpop.f32.mrb[0].mxu0
    %v884 = vpop.f32.mrb[0].mxu0
    %v885 = vadd.f32 0.0, %v884
    %v886 = vpop.f32.mrb[0].mxu0
    %887 = vmatprep.mubr.bf16.mxu0 0
    %888 = vmatmul.mubr.bf16.gmra.mrb[0].mxu0 %v759
    %v889 = vpop.f32.mrb[0].mxu0
    %v890 = vadd.f32 0.0, %v889
    %v891 = vpop.f32.mrb[0].mxu0
    %v892 = vpop.f32.mrb[0].mxu0
    %v893 = vadd.f32 0.0, %v892
    %v894 = vpop.f32.mrb[0].mxu0
    %895 = vmatprep.mubr.bf16.mxu0 0
    %896 = vmatmul.mubr.bf16.gmra.mrb[0].mxu0 %v760
    %v897 = vpop.f32.mrb[0].mxu0
    %v898 = vadd.f32 0.0, %v897
    %v899 = vpop.f32.mrb[0].mxu0
    %v900 = vpop.f32.mrb[0].mxu0
    %v901 = vadd.f32 0.0, %v900
    %v902 = vpop.f32.mrb[0].mxu0
    %903 = vmatprep.mubr.bf16.mxu0 0
    %904 = vmatmul.mubr.bf16.gmra.mrb[0].mxu0 %v761
    %v905 = vpop.f32.mrb[0].mxu0
    %v906 = vadd.f32 0.0, %v905
    %v907 = vpop.f32.mrb[0].mxu0
    %v908 = vpop.f32.mrb[0].mxu0
    %v909 = vadd.f32 0.0, %v908
    %v910 = vpop.f32.mrb[0].mxu0
    %911 = vmatprep.mubr.bf16.mxu0 0
    %912 = vmatmul.mubr.bf16.gmra.mrb[0].mxu0 %v762
    %v913 = vpop.f32.mrb[0].mxu0
    %v914 = vadd.f32 0.0, %v913
    %v915 = vpop.f32.mrb[0].mxu0
    %v916 = vpop.f32.mrb[0].mxu0
    %v917 = vadd.f32 0.0, %v916
    %v918 = vpop.f32.mrb[0].mxu0
    %919 = vmatprep.mubr.bf16.mxu0 0
    %920 = vmatmul.mubr.bf16.gmra.mrb[0].mxu0 %v763
    %v921 = vpop.f32.mrb[0].mxu0
    %v922 = vadd.f32 0.0, %v921
    %v923 = vpop.f32.mrb[0].mxu0
    %v924 = vpop.f32.mrb[0].mxu0
    %v925 = vadd.f32 0.0, %v924
    %v926 = vpop.f32.mrb[0].mxu0
    %927 = vmatprep.mubr.bf16.mxu0 0
    %928 = vmatmul.mubr.bf16.gmra.mrb[0].mxu0 %v764
    %v929 = vpop.f32.mrb[0].mxu0
    %v930 = vadd.f32 0.0, %v929
    %v931 = vpop.f32.mrb[0].mxu0
    %v932 = vpop.f32.mrb[0].mxu0
    %v933 = vadd.f32 0.0, %v932
    %v934 = vpop.f32.mrb[0].mxu0
    %935 = vmatprep.mubr.bf16.mxu0 0
    %936 = vmatmul.mubr.bf16.gmra.mrb[0].mxu0 %v765
    %v937 = vpop.f32.mrb[0].mxu0
    %v938 = vadd.f32 0.0, %v937
    %v939 = vpop.f32.mrb[0].mxu0
    %v940 = vpop.f32.mrb[0].mxu0
    %v941 = vadd.f32 0.0, %v940
    %v942 = vpop.f32.mrb[0].mxu0
    %943 = vdwg.mxu0
    %v960 = vunpack.c.l.b16 %v783
    %v961 = vunpack.c.l.b16 %v784
    %v962 = vunpack.c.l.b16 %v785
    %v963 = vunpack.c.l.b16 %v786
    %v964 = vunpack.c.l.b16 %v787
    %v965 = vunpack.c.l.b16 %v788
    %v966 = vunpack.c.l.b16 %v789
    %v967 = vunpack.c.l.b16 %v790
    %v968 = vunpack.c.l.b16 %v791
    %v969 = vunpack.c.l.b16 %v792
    %v970 = vunpack.c.l.b16 %v793
    %v971 = vunpack.c.l.b16 %v794
    %v972 = vunpack.c.l.b16 %v795
    %v973 = vunpack.c.l.b16 %v796
    %v974 = vunpack.c.l.b16 %v797
    %v975 = vunpack.c.l.b16 %v798
    %v976 = vpack.c.b16 %v961, %v960
    %v977 = vpack.c.b16 %v963, %v962
    %v978 = vpack.c.b16 %v965, %v964
    %v979 = vpack.c.b16 %v967, %v966
    %v980 = vpack.c.b16 %v969, %v968
    %v981 = vpack.c.b16 %v971, %v970
    %v982 = vpack.c.b16 %v973, %v972
    %v983 = vpack.c.b16 %v975, %v974
    %992 = vmatprep.subr.bf16.mxu0 0
    %993 = vmatpush1.bf16.msra.mxu0 %v976
    %994 = vmatprep.subr.bf16.mxu0 0
    %995 = vmatpush1.bf16.msra.mxu0 %v977
    %996 = vmatprep.subr.bf16.mxu0 0
    %997 = vmatpush1.bf16.msra.mxu0 %v978
    %998 = vmatprep.subr.bf16.mxu0 0
    %999 = vmatpush1.bf16.msra.mxu0 %v979
    %1000 = vmatprep.subr.bf16.mxu0 0
    %1001 = vmatpush1.bf16.msra.mxu0 %v980
    %1002 = vmatprep.subr.bf16.mxu0 0
    %1003 = vmatpush1.bf16.msra.mxu0 %v981
    %1004 = vmatprep.subr.bf16.mxu0 0
    %1005 = vmatpush1.bf16.msra.mxu0 %v982
    %1006 = vmatprep.subr.bf16.mxu0 0
    %1007 = vmatpush1.bf16.msra.mxu0 %v983
    %1008 = vmatprep.subr.bf16.mxu0 0
    %1009 = vmatpush1.bf16.msra.mxu0 0
    %1010 = vmatprep.subr.bf16.mxu0 0
    %1011 = vmatpush1.bf16.msra.mxu0 0
    %1012 = vmatprep.subr.bf16.mxu0 0
    %1013 = vmatpush1.bf16.msra.mxu0 0
    %1014 = vmatprep.subr.bf16.mxu0 0
    %1015 = vmatpush1.bf16.msra.mxu0 0
    %1016 = vmatprep.subr.bf16.mxu0 0
    %1017 = vmatpush1.bf16.msra.mxu0 0
    %1018 = vmatprep.subr.bf16.mxu0 0
    %1019 = vmatpush1.bf16.msra.mxu0 0
    %1020 = vmatprep.subr.bf16.mxu0 0
    %1021 = vmatpush1.bf16.msra.mxu0 0
    %1022 = vmatprep.subr.bf16.mxu0 0
    %1023 = vmatpush1.bf16.msra.mxu0 0
    %1024 = vmatprep.mubr.bf16.mxu0 0
    %1025 = vmatmul.mubr.bf16.gmra.mrb[0].mxu0 %v758
    %v1026 = vpop.f32.mrb[0].mxu0
    %v1027 = vadd.f32 0.0, %v1026
    %v1028 = vpop.f32.mrb[0].mxu0
    %v1029 = vpop.f32.mrb[0].mxu0
    %v1030 = vadd.f32 0.0, %v1029
    %v1031 = vpop.f32.mrb[0].mxu0
    %1032 = vmatprep.mubr.bf16.mxu0 0
    %1033 = vmatmul.mubr.bf16.gmra.mrb[0].mxu0 %v759
    %v1034 = vpop.f32.mrb[0].mxu0
    %v1035 = vadd.f32 0.0, %v1034
    %v1036 = vpop.f32.mrb[0].mxu0
    %v1037 = vpop.f32.mrb[0].mxu0
    %v1038 = vadd.f32 0.0, %v1037
    %v1039 = vpop.f32.mrb[0].mxu0
    %1040 = vmatprep.mubr.bf16.mxu0 0
    %1041 = vmatmul.mubr.bf16.gmra.mrb[0].mxu0 %v760
    %v1042 = vpop.f32.mrb[0].mxu0
    %v1043 = vadd.f32 0.0, %v1042
    %v1044 = vpop.f32.mrb[0].mxu0
    %v1045 = vpop.f32.mrb[0].mxu0
    %v1046 = vadd.f32 0.0, %v1045
    %v1047 = vpop.f32.mrb[0].mxu0
    %1048 = vmatprep.mubr.bf16.mxu0 0
    %1049 = vmatmul.mubr.bf16.gmra.mrb[0].mxu0 %v761
    %v1050 = vpop.f32.mrb[0].mxu0
    %v1051 = vadd.f32 0.0, %v1050
    %v1052 = vpop.f32.mrb[0].mxu0
    %v1053 = vpop.f32.mrb[0].mxu0
    %v1054 = vadd.f32 0.0, %v1053
    %v1055 = vpop.f32.mrb[0].mxu0
    %1056 = vmatprep.mubr.bf16.mxu0 0
    %1057 = vmatmul.mubr.bf16.gmra.mrb[0].mxu0 %v762
    %v1058 = vpop.f32.mrb[0].mxu0
    %v1059 = vadd.f32 0.0, %v1058
    %v1060 = vpop.f32.mrb[0].mxu0
    %v1061 = vpop.f32.mrb[0].mxu0
    %v1062 = vadd.f32 0.0, %v1061
    %v1063 = vpop.f32.mrb[0].mxu0
    %1064 = vmatprep.mubr.bf16.mxu0 0
    %1065 = vmatmul.mubr.bf16.gmra.mrb[0].mxu0 %v763
    %v1066 = vpop.f32.mrb[0].mxu0
    %v1067 = vadd.f32 0.0, %v1066
    %v1068 = vpop.f32.mrb[0].mxu0
    %v1069 = vpop.f32.mrb[0].mxu0
    %v1070 = vadd.f32 0.0, %v1069
    %v1071 = vpop.f32.mrb[0].mxu0
    %1072 = vmatprep.mubr.bf16.mxu0 0
    %1073 = vmatmul.mubr.bf16.gmra.mrb[0].mxu0 %v764
    %v1074 = vpop.f32.mrb[0].mxu0
    %v1075 = vadd.f32 0.0, %v1074
    %v1076 = vpop.f32.mrb[0].mxu0
    %v1077 = vpop.f32.mrb[0].mxu0
    %v1078 = vadd.f32 0.0, %v1077
    %v1079 = vpop.f32.mrb[0].mxu0
    %1080 = vmatprep.mubr.bf16.mxu0 0
    %1081 = vmatmul.mubr.bf16.gmra.mrb[0].mxu0 %v765
    %v1082 = vpop.f32.mrb[0].mxu0
    %v1083 = vadd.f32 0.0, %v1082
    %v1084 = vpop.f32.mrb[0].mxu0
    %v1085 = vpop.f32.mrb[0].mxu0
    %v1086 = vadd.f32 0.0, %v1085
    %v1087 = vpop.f32.mrb[0].mxu0
    %1088 = vdwg.mxu0
    %v1089 = vpack.c.bf16 %v885, %v882
    %v1090 = vpack.c.bf16 %v893, %v890
    %v1091 = vpack.c.bf16 %v901, %v898
    %v1092 = vpack.c.bf16 %v909, %v906
    %v1093 = vpack.c.bf16 %v917, %v914
    %v1094 = vpack.c.bf16 %v925, %v922
    %v1095 = vpack.c.bf16 %v933, %v930
    %v1096 = vpack.c.bf16 %v941, %v938
    %1097 = vmatprep.subr.bf16.mxu0 0
    %1098 = vmatpush1.bf16.msra.mxu0 %v1089
    %1099 = vmatprep.subr.bf16.mxu0 0
    %1100 = vmatpush1.bf16.msra.mxu0 %v1090
    %1101 = vmatprep.subr.bf16.mxu0 0
    %1102 = vmatpush1.bf16.msra.mxu0 %v1091
    %1103 = vmatprep.subr.bf16.mxu0 0
    %1104 = vmatpush1.bf16.msra.mxu0 %v1092
    %1105 = vmatprep.subr.bf16.mxu0 0
    %1106 = vmatpush1.bf16.msra.mxu0 %v1093
    %1107 = vmatprep.subr.bf16.mxu0 0
    %1108 = vmatpush1.bf16.msra.mxu0 %v1094
    %1109 = vmatprep.subr.bf16.mxu0 0
    %1110 = vmatpush1.bf16.msra.mxu0 %v1095
    %1111 = vmatprep.subr.bf16.mxu0 0
    %1112 = vmatpush1.bf16.msra.mxu0 %v1096
    %1113 = vmatprep.subr.bf16.mxu0 0
    %1114 = vmatpush1.bf16.msra.mxu0 0
    %1115 = vmatprep.subr.bf16.mxu0 0
    %1116 = vmatpush1.bf16.msra.mxu0 0
    %1117 = vmatprep.subr.bf16.mxu0 0
    %1118 = vmatpush1.bf16.msra.mxu0 0
    %1119 = vmatprep.subr.bf16.mxu0 0
    %1120 = vmatpush1.bf16.msra.mxu0 0
    %1121 = vmatprep.subr.bf16.mxu0 0
    %1122 = vmatpush1.bf16.msra.mxu0 0
    %1123 = vmatprep.subr.bf16.mxu0 0
    %1124 = vmatpush1.bf16.msra.mxu0 0
    %1125 = vmatprep.subr.bf16.mxu0 0
    %1126 = vmatpush1.bf16.msra.mxu0 0
    %1127 = vmatprep.subr.bf16.mxu0 0
    %1128 = vmatpush1.bf16.msra.mxu0 0
    %1129 = vmatprep.mubr.bf16.mxu0 0
    %1130 = vmatmul.mubr.bf16.gmra.mrb[0].mxu0 %v494
    %v1131 = vpop.f32.mrb[0].mxu0
    %v1132 = vadd.f32 0.0, %v1131
    %v1133 = vpop.f32.mrb[0].mxu0
    %v1134 = vpop.f32.mrb[0].mxu0
    %v1135 = vadd.f32 0.0, %v1134
    %v1136 = vpop.f32.mrb[0].mxu0
    %1137 = vmatprep.mubr.bf16.mxu0 0
    %1138 = vmatmul.mubr.bf16.gmra.mrb[0].mxu0 %v495
    %v1139 = vpop.f32.mrb[0].mxu0
    %v1140 = vadd.f32 0.0, %v1139
    %v1141 = vpop.f32.mrb[0].mxu0
    %v1142 = vpop.f32.mrb[0].mxu0
    %v1143 = vadd.f32 0.0, %v1142
    %v1144 = vpop.f32.mrb[0].mxu0
    %1145 = vmatprep.mubr.bf16.mxu0 0
    %1146 = vmatmul.mubr.bf16.gmra.mrb[0].mxu0 %v496
    %v1147 = vpop.f32.mrb[0].mxu0
    %v1148 = vadd.f32 0.0, %v1147
    %v1149 = vpop.f32.mrb[0].mxu0
    %v1150 = vpop.f32.mrb[0].mxu0
    %v1151 = vadd.f32 0.0, %v1150
    %v1152 = vpop.f32.mrb[0].mxu0
    %1153 = vmatprep.mubr.bf16.mxu0 0
    %1154 = vmatmul.mubr.bf16.gmra.mrb[0].mxu0 %v497
    %v1155 = vpop.f32.mrb[0].mxu0
    %v1156 = vadd.f32 0.0, %v1155
    %v1157 = vpop.f32.mrb[0].mxu0
    %v1158 = vpop.f32.mrb[0].mxu0
    %v1159 = vadd.f32 0.0, %v1158
    %v1160 = vpop.f32.mrb[0].mxu0
    %1161 = vmatprep.mubr.bf16.mxu0 0
    %1162 = vmatmul.mubr.bf16.gmra.mrb[0].mxu0 %v498
    %v1163 = vpop.f32.mrb[0].mxu0
    %v1164 = vadd.f32 0.0, %v1163
    %v1165 = vpop.f32.mrb[0].mxu0
    %v1166 = vpop.f32.mrb[0].mxu0
    %v1167 = vadd.f32 0.0, %v1166
    %v1168 = vpop.f32.mrb[0].mxu0
    %1169 = vmatprep.mubr.bf16.mxu0 0
    %1170 = vmatmul.mubr.bf16.gmra.mrb[0].mxu0 %v499
    %v1171 = vpop.f32.mrb[0].mxu0
    %v1172 = vadd.f32 0.0, %v1171
    %v1173 = vpop.f32.mrb[0].mxu0
    %v1174 = vpop.f32.mrb[0].mxu0
    %v1175 = vadd.f32 0.0, %v1174
    %v1176 = vpop.f32.mrb[0].mxu0
    %1177 = vmatprep.mubr.bf16.mxu0 0
    %1178 = vmatmul.mubr.bf16.gmra.mrb[0].mxu0 %v500
    %v1179 = vpop.f32.mrb[0].mxu0
    %v1180 = vadd.f32 0.0, %v1179
    %v1181 = vpop.f32.mrb[0].mxu0
    %v1182 = vpop.f32.mrb[0].mxu0
    %v1183 = vadd.f32 0.0, %v1182
    %v1184 = vpop.f32.mrb[0].mxu0
    %1185 = vmatprep.mubr.bf16.mxu0 0
    %1186 = vmatmul.mubr.bf16.gmra.mrb[0].mxu0 %v501
    %v1187 = vpop.f32.mrb[0].mxu0
    %v1188 = vadd.f32 0.0, %v1187
    %v1189 = vpop.f32.mrb[0].mxu0
    %v1190 = vpop.f32.mrb[0].mxu0
    %v1191 = vadd.f32 0.0, %v1190
    %v1192 = vpop.f32.mrb[0].mxu0
    %1193 = vdwg.mxu0
    %v1194 = vmul.f32 %v610, %v1132
    %v1195 = vmul.f32 %v615, %v1135
    %v1196 = vmul.f32 %v620, %v1140
    %v1197 = vmul.f32 %v625, %v1143
    %v1198 = vmul.f32 %v630, %v1148
    %v1199 = vmul.f32 %v635, %v1151
    %v1200 = vmul.f32 %v640, %v1156
    %v1201 = vmul.f32 %v645, %v1159
    %v1202 = vmul.f32 %v650, %v1164
    %v1203 = vmul.f32 %v655, %v1167
    %v1204 = vmul.f32 %v660, %v1172
    %v1205 = vmul.f32 %v665, %v1175
    %v1206 = vmul.f32 %v670, %v1180
    %v1207 = vmul.f32 %v675, %v1183
    %v1208 = vmul.f32 %v680, %v1188
    %v1209 = vmul.f32 %v685, %v1191
    %v1210 = vadd.f32 %v1194, %v1027
    %v1211 = vadd.f32 %v1195, %v1030
    %v1212 = vadd.f32 %v1196, %v1035
    %v1213 = vadd.f32 %v1197, %v1038
    %v1214 = vadd.f32 %v1198, %v1043
    %v1215 = vadd.f32 %v1199, %v1046
    %v1216 = vadd.f32 %v1200, %v1051
    %v1217 = vadd.f32 %v1201, %v1054
    %v1218 = vadd.f32 %v1202, %v1059
    %v1219 = vadd.f32 %v1203, %v1062
    %v1220 = vadd.f32 %v1204, %v1067
    %v1221 = vadd.f32 %v1205, %v1070
    %v1222 = vadd.f32 %v1206, %v1075
    %v1223 = vadd.f32 %v1207, %v1078
    %v1224 = vadd.f32 %v1208, %v1083
    %v1225 = vadd.f32 %v1209, %v1086
    %s1226 = scalar_lea.vmem %s4, 1
    %v1227 = vld [vmem:[%s1226] sm:$0x1]
    %v1229 = vlaneseq
    %v1230 = vshrl.u32 %v1229, 7
    %v1231 = vsub.s32 0, %v1230
    %v1232 = vrot.slane %v1227, %v1231
    %v1234 = vadd.f32 %v1210, %v1232
    %v1235 = vadd.f32 %v1211, %v1232
    %v1236 = vadd.f32 %v1212, %v1232
    %v1237 = vadd.f32 %v1213, %v1232
    %v1238 = vadd.f32 %v1214, %v1232
    %v1239 = vadd.f32 %v1215, %v1232
    %v1240 = vadd.f32 %v1216, %v1232
    %v1241 = vadd.f32 %v1217, %v1232
    %v1242 = vadd.f32 %v1218, %v1232
    %v1243 = vadd.f32 %v1219, %v1232
    %v1244 = vadd.f32 %v1220, %v1232
    %v1245 = vadd.f32 %v1221, %v1232
    %v1246 = vadd.f32 %v1222, %v1232
    %v1247 = vadd.f32 %v1223, %v1232
    %v1248 = vadd.f32 %v1224, %v1232
    %v1249 = vadd.f32 %v1225, %v1232
    %v1250 = vmax.f32 %v1234, 0.0
    %v1251 = vmax.f32 %v1235, 0.0
    %v1252 = vmax.f32 %v1236, 0.0
    %v1253 = vmax.f32 %v1237, 0.0
    %v1254 = vmax.f32 %v1238, 0.0
    %v1255 = vmax.f32 %v1239, 0.0
    %v1256 = vmax.f32 %v1240, 0.0
    %v1257 = vmax.f32 %v1241, 0.0
    %v1258 = vmax.f32 %v1242, 0.0
    %v1259 = vmax.f32 %v1243, 0.0
    %v1260 = vmax.f32 %v1244, 0.0
    %v1261 = vmax.f32 %v1245, 0.0
    %v1262 = vmax.f32 %v1246, 0.0
    %v1263 = vmax.f32 %v1247, 0.0
    %v1264 = vmax.f32 %v1248, 0.0
    %v1265 = vmax.f32 %v1249, 0.0
    %v1266 = vpack.c.bf16 %v1251, %v1250
    %v1267 = vpack.c.bf16 %v1253, %v1252
    %v1268 = vpack.c.bf16 %v1255, %v1254
    %v1269 = vpack.c.bf16 %v1257, %v1256
    %v1270 = vpack.c.bf16 %v1259, %v1258
    %v1271 = vpack.c.bf16 %v1261, %v1260
    %v1272 = vpack.c.bf16 %v1263, %v1262
    %v1273 = vpack.c.bf16 %v1265, %v1264
    %s1274 = scalar_lea.vmem [#allocation2], 256
    %v1275 = vld [vmem:[%s1274] sm:$0xf]
    %v1276 = vld [vmem:[%s1274 + $0x4] sm:$0xf]
    %v1277 = vld [vmem:[%s1274 + $0x8] sm:$0xf]
    %v1278 = vld [vmem:[%s1274 + $0xc] sm:$0xf]
    %v1279 = vld [vmem:[%s1274 + $0x10] sm:$0xf]
    %v1280 = vld [vmem:[%s1274 + $0x14] sm:$0xf]
    %v1281 = vld [vmem:[%s1274 + $0x18] sm:$0xf]
    %v1282 = vld [vmem:[%s1274 + $0x1c] sm:$0xf]
    %v1283 = vld [vmem:[%s1274 + $0x20] sm:$0xf]
    %v1284 = vld [vmem:[%s1274 + $0x24] sm:$0xf]
    %v1285 = vld [vmem:[%s1274 + $0x28] sm:$0xf]
    %v1286 = vld [vmem:[%s1274 + $0x2c] sm:$0xf]
    %v1287 = vld [vmem:[%s1274 + $0x30] sm:$0xf]
    %v1288 = vld [vmem:[%s1274 + $0x34] sm:$0xf]
    %v1289 = vld [vmem:[%s1274 + $0x38] sm:$0xf]
    %v1290 = vld [vmem:[%s1274 + $0x3c] sm:$0xf]
    %v1291 = vld [vmem:[%s1274 + $0x40] sm:$0xf]
    %v1292 = vld [vmem:[%s1274 + $0x44] sm:$0xf]
    %v1293 = vld [vmem:[%s1274 + $0x48] sm:$0xf]
    %v1294 = vld [vmem:[%s1274 + $0x4c] sm:$0xf]
    %v1295 = vld [vmem:[%s1274 + $0x50] sm:$0xf]
    %v1296 = vld [vmem:[%s1274 + $0x54] sm:$0xf]
    %v1297 = vld [vmem:[%s1274 + $0x58] sm:$0xf]
    %v1298 = vld [vmem:[%s1274 + $0x5c] sm:$0xf]
    %v1299 = vld [vmem:[%s1274 + $0x60] sm:$0xf]
    %v1300 = vld [vmem:[%s1274 + $0x64] sm:$0xf]
    %v1301 = vld [vmem:[%s1274 + $0x68] sm:$0xf]
    %v1302 = vld [vmem:[%s1274 + $0x6c] sm:$0xf]
    %v1303 = vld [vmem:[%s1274 + $0x70] sm:$0xf]
    %v1304 = vld [vmem:[%s1274 + $0x74] sm:$0xf]
    %v1305 = vld [vmem:[%s1274 + $0x78] sm:$0xf]
    %v1306 = vld [vmem:[%s1274 + $0x7c] sm:$0xf]
    %v1323 = vunpack.c.l.b16 %v1275
    %v1324 = vunpack.c.l.b16 %v1276
    %v1325 = vunpack.c.l.b16 %v1277
    %v1326 = vunpack.c.l.b16 %v1278
    %v1327 = vunpack.c.l.b16 %v1279
    %v1328 = vunpack.c.l.b16 %v1280
    %v1329 = vunpack.c.l.b16 %v1281
    %v1330 = vunpack.c.l.b16 %v1282
    %v1331 = vunpack.c.l.b16 %v1283
    %v1332 = vunpack.c.l.b16 %v1284
    %v1333 = vunpack.c.l.b16 %v1285
    %v1334 = vunpack.c.l.b16 %v1286
    %v1335 = vunpack.c.l.b16 %v1287
    %v1336 = vunpack.c.l.b16 %v1288
    %v1337 = vunpack.c.l.b16 %v1289
    %v1338 = vunpack.c.l.b16 %v1290
    %v1339 = vpack.c.b16 %v1324, %v1323
    %v1340 = vpack.c.b16 %v1326, %v1325
    %v1341 = vpack.c.b16 %v1328, %v1327
    %v1342 = vpack.c.b16 %v1330, %v1329
    %v1343 = vpack.c.b16 %v1332, %v1331
    %v1344 = vpack.c.b16 %v1334, %v1333
    %v1345 = vpack.c.b16 %v1336, %v1335
    %v1346 = vpack.c.b16 %v1338, %v1337
    %1355 = vmatprep.subr.bf16.mxu0 0
    %1356 = vmatpush1.bf16.msra.mxu0 %v1339
    %1357 = vmatprep.subr.bf16.mxu0 0
    %1358 = vmatpush1.bf16.msra.mxu0 %v1340
    %1359 = vmatprep.subr.bf16.mxu0 0
    %1360 = vmatpush1.bf16.msra.mxu0 %v1341
    %1361 = vmatprep.subr.bf16.mxu0 0
    %1362 = vmatpush1.bf16.msra.mxu0 %v1342
    %1363 = vmatprep.subr.bf16.mxu0 0
    %1364 = vmatpush1.bf16.msra.mxu0 %v1343
    %1365 = vmatprep.subr.bf16.mxu0 0
    %1366 = vmatpush1.bf16.msra.mxu0 %v1344
    %1367 = vmatprep.subr.bf16.mxu0 0
    %1368 = vmatpush1.bf16.msra.mxu0 %v1345
    %1369 = vmatprep.subr.bf16.mxu0 0
    %1370 = vmatpush1.bf16.msra.mxu0 %v1346
    %1371 = vmatprep.subr.bf16.mxu0 0
    %1372 = vmatpush1.bf16.msra.mxu0 0
    %1373 = vmatprep.subr.bf16.mxu0 0
    %1374 = vmatpush1.bf16.msra.mxu0 0
    %1375 = vmatprep.subr.bf16.mxu0 0
    %1376 = vmatpush1.bf16.msra.mxu0 0
    %1377 = vmatprep.subr.bf16.mxu0 0
    %1378 = vmatpush1.bf16.msra.mxu0 0
    %1379 = vmatprep.subr.bf16.mxu0 0
    %1380 = vmatpush1.bf16.msra.mxu0 0
    %1381 = vmatprep.subr.bf16.mxu0 0
    %1382 = vmatpush1.bf16.msra.mxu0 0
    %1383 = vmatprep.subr.bf16.mxu0 0
    %1384 = vmatpush1.bf16.msra.mxu0 0
    %1385 = vmatprep.subr.bf16.mxu0 0
    %1386 = vmatpush1.bf16.msra.mxu0 0
    %1387 = vmatprep.mubr.bf16.mxu0 0
    %1388 = vmatmul.mubr.bf16.gmra.mrb[0].mxu0 %v1266
    %v1389 = vpop.f32.mrb[0].mxu0
    %v1390 = vadd.f32 0.0, %v1389
    %v1391 = vpop.f32.mrb[0].mxu0
    %v1392 = vpop.f32.mrb[0].mxu0
    %v1393 = vadd.f32 0.0, %v1392
    %v1394 = vpop.f32.mrb[0].mxu0
    %1395 = vmatprep.mubr.bf16.mxu0 0
    %1396 = vmatmul.mubr.bf16.gmra.mrb[0].mxu0 %v1267
    %v1397 = vpop.f32.mrb[0].mxu0
    %v1398 = vadd.f32 0.0, %v1397
    %v1399 = vpop.f32.mrb[0].mxu0
    %v1400 = vpop.f32.mrb[0].mxu0
    %v1401 = vadd.f32 0.0, %v1400
    %v1402 = vpop.f32.mrb[0].mxu0
    %1403 = vmatprep.mubr.bf16.mxu0 0
    %1404 = vmatmul.mubr.bf16.gmra.mrb[0].mxu0 %v1268
    %v1405 = vpop.f32.mrb[0].mxu0
    %v1406 = vadd.f32 0.0, %v1405
    %v1407 = vpop.f32.mrb[0].mxu0
    %v1408 = vpop.f32.mrb[0].mxu0
    %v1409 = vadd.f32 0.0, %v1408
    %v1410 = vpop.f32.mrb[0].mxu0
    %1411 = vmatprep.mubr.bf16.mxu0 0
    %1412 = vmatmul.mubr.bf16.gmra.mrb[0].mxu0 %v1269
    %v1413 = vpop.f32.mrb[0].mxu0
    %v1414 = vadd.f32 0.0, %v1413
    %v1415 = vpop.f32.mrb[0].mxu0
    %v1416 = vpop.f32.mrb[0].mxu0
    %v1417 = vadd.f32 0.0, %v1416
    %v1418 = vpop.f32.mrb[0].mxu0
    %1419 = vmatprep.mubr.bf16.mxu0 0
    %1420 = vmatmul.mubr.bf16.gmra.mrb[0].mxu0 %v1270
    %v1421 = vpop.f32.mrb[0].mxu0
    %v1422 = vadd.f32 0.0, %v1421
    %v1423 = vpop.f32.mrb[0].mxu0
    %v1424 = vpop.f32.mrb[0].mxu0
    %v1425 = vadd.f32 0.0, %v1424
    %v1426 = vpop.f32.mrb[0].mxu0
    %1427 = vmatprep.mubr.bf16.mxu0 0
    %1428 = vmatmul.mubr.bf16.gmra.mrb[0].mxu0 %v1271
    %v1429 = vpop.f32.mrb[0].mxu0
    %v1430 = vadd.f32 0.0, %v1429
    %v1431 = vpop.f32.mrb[0].mxu0
    %v1432 = vpop.f32.mrb[0].mxu0
    %v1433 = vadd.f32 0.0, %v1432
    %v1434 = vpop.f32.mrb[0].mxu0
    %1435 = vmatprep.mubr.bf16.mxu0 0
    %1436 = vmatmul.mubr.bf16.gmra.mrb[0].mxu0 %v1272
    %v1437 = vpop.f32.mrb[0].mxu0
    %v1438 = vadd.f32 0.0, %v1437
    %v1439 = vpop.f32.mrb[0].mxu0
    %v1440 = vpop.f32.mrb[0].mxu0
    %v1441 = vadd.f32 0.0, %v1440
    %v1442 = vpop.f32.mrb[0].mxu0
    %1443 = vmatprep.mubr.bf16.mxu0 0
    %1444 = vmatmul.mubr.bf16.gmra.mrb[0].mxu0 %v1273
    %v1445 = vpop.f32.mrb[0].mxu0
    %v1446 = vadd.f32 0.0, %v1445
    %v1447 = vpop.f32.mrb[0].mxu0
    %v1448 = vpop.f32.mrb[0].mxu0
    %v1449 = vadd.f32 0.0, %v1448
    %v1450 = vpop.f32.mrb[0].mxu0
    %1451 = vdwg.mxu0
    %v1468 = vunpack.c.l.b16 %v1291
    %v1469 = vunpack.c.l.b16 %v1292
    %v1470 = vunpack.c.l.b16 %v1293
    %v1471 = vunpack.c.l.b16 %v1294
    %v1472 = vunpack.c.l.b16 %v1295
    %v1473 = vunpack.c.l.b16 %v1296
    %v1474 = vunpack.c.l.b16 %v1297
    %v1475 = vunpack.c.l.b16 %v1298
    %v1476 = vunpack.c.l.b16 %v1299
    %v1477 = vunpack.c.l.b16 %v1300
    %v1478 = vunpack.c.l.b16 %v1301
    %v1479 = vunpack.c.l.b16 %v1302
    %v1480 = vunpack.c.l.b16 %v1303
    %v1481 = vunpack.c.l.b16 %v1304
    %v1482 = vunpack.c.l.b16 %v1305
    %v1483 = vunpack.c.l.b16 %v1306
    %v1484 = vpack.c.b16 %v1469, %v1468
    %v1485 = vpack.c.b16 %v1471, %v1470
    %v1486 = vpack.c.b16 %v1473, %v1472
    %v1487 = vpack.c.b16 %v1475, %v1474
    %v1488 = vpack.c.b16 %v1477, %v1476
    %v1489 = vpack.c.b16 %v1479, %v1478
    %v1490 = vpack.c.b16 %v1481, %v1480
    %v1491 = vpack.c.b16 %v1483, %v1482
    %1500 = vmatprep.subr.bf16.mxu0 0
    %1501 = vmatpush1.bf16.msra.mxu0 %v1484
    %1502 = vmatprep.subr.bf16.mxu0 0
    %1503 = vmatpush1.bf16.msra.mxu0 %v1485
    %1504 = vmatprep.subr.bf16.mxu0 0
    %1505 = vmatpush1.bf16.msra.mxu0 %v1486
    %1506 = vmatprep.subr.bf16.mxu0 0
    %1507 = vmatpush1.bf16.msra.mxu0 %v1487
    %1508 = vmatprep.subr.bf16.mxu0 0
    %1509 = vmatpush1.bf16.msra.mxu0 %v1488
    %1510 = vmatprep.subr.bf16.mxu0 0
    %1511 = vmatpush1.bf16.msra.mxu0 %v1489
    %1512 = vmatprep.subr.bf16.mxu0 0
    %1513 = vmatpush1.bf16.msra.mxu0 %v1490
    %1514 = vmatprep.subr.bf16.mxu0 0
    %1515 = vmatpush1.bf16.msra.mxu0 %v1491
    %1516 = vmatprep.subr.bf16.mxu0 0
    %1517 = vmatpush1.bf16.msra.mxu0 0
    %1518 = vmatprep.subr.bf16.mxu0 0
    %1519 = vmatpush1.bf16.msra.mxu0 0
    %1520 = vmatprep.subr.bf16.mxu0 0
    %1521 = vmatpush1.bf16.msra.mxu0 0
    %1522 = vmatprep.subr.bf16.mxu0 0
    %1523 = vmatpush1.bf16.msra.mxu0 0
    %1524 = vmatprep.subr.bf16.mxu0 0
    %1525 = vmatpush1.bf16.msra.mxu0 0
    %1526 = vmatprep.subr.bf16.mxu0 0
    %1527 = vmatpush1.bf16.msra.mxu0 0
    %1528 = vmatprep.subr.bf16.mxu0 0
    %1529 = vmatpush1.bf16.msra.mxu0 0
    %1530 = vmatprep.subr.bf16.mxu0 0
    %1531 = vmatpush1.bf16.msra.mxu0 0
    %1532 = vmatprep.mubr.bf16.mxu0 0
    %1533 = vmatmul.mubr.bf16.gmra.mrb[0].mxu0 %v1266
    %v1534 = vpop.f32.mrb[0].mxu0
    %v1535 = vadd.f32 0.0, %v1534
    %v1536 = vpop.f32.mrb[0].mxu0
    %v1537 = vpop.f32.mrb[0].mxu0
    %v1538 = vadd.f32 0.0, %v1537
    %v1539 = vpop.f32.mrb[0].mxu0
    %1540 = vmatprep.mubr.bf16.mxu0 0
    %1541 = vmatmul.mubr.bf16.gmra.mrb[0].mxu0 %v1267
    %v1542 = vpop.f32.mrb[0].mxu0
    %v1543 = vadd.f32 0.0, %v1542
    %v1544 = vpop.f32.mrb[0].mxu0
    %v1545 = vpop.f32.mrb[0].mxu0
    %v1546 = vadd.f32 0.0, %v1545
    %v1547 = vpop.f32.mrb[0].mxu0
    %1548 = vmatprep.mubr.bf16.mxu0 0
    %1549 = vmatmul.mubr.bf16.gmra.mrb[0].mxu0 %v1268
    %v1550 = vpop.f32.mrb[0].mxu0
    %v1551 = vadd.f32 0.0, %v1550
    %v1552 = vpop.f32.mrb[0].mxu0
    %v1553 = vpop.f32.mrb[0].mxu0
    %v1554 = vadd.f32 0.0, %v1553
    %v1555 = vpop.f32.mrb[0].mxu0
    %1556 = vmatprep.mubr.bf16.mxu0 0
    %1557 = vmatmul.mubr.bf16.gmra.mrb[0].mxu0 %v1269
    %v1558 = vpop.f32.mrb[0].mxu0
    %v1559 = vadd.f32 0.0, %v1558
    %v1560 = vpop.f32.mrb[0].mxu0
    %v1561 = vpop.f32.mrb[0].mxu0
    %v1562 = vadd.f32 0.0, %v1561
    %v1563 = vpop.f32.mrb[0].mxu0
    %1564 = vmatprep.mubr.bf16.mxu0 0
    %1565 = vmatmul.mubr.bf16.gmra.mrb[0].mxu0 %v1270
    %v1566 = vpop.f32.mrb[0].mxu0
    %v1567 = vadd.f32 0.0, %v1566
    %v1568 = vpop.f32.mrb[0].mxu0
    %v1569 = vpop.f32.mrb[0].mxu0
    %v1570 = vadd.f32 0.0, %v1569
    %v1571 = vpop.f32.mrb[0].mxu0
    %1572 = vmatprep.mubr.bf16.mxu0 0
    %1573 = vmatmul.mubr.bf16.gmra.mrb[0].mxu0 %v1271
    %v1574 = vpop.f32.mrb[0].mxu0
    %v1575 = vadd.f32 0.0, %v1574
    %v1576 = vpop.f32.mrb[0].mxu0
    %v1577 = vpop.f32.mrb[0].mxu0
    %v1578 = vadd.f32 0.0, %v1577
    %v1579 = vpop.f32.mrb[0].mxu0
    %1580 = vmatprep.mubr.bf16.mxu0 0
    %1581 = vmatmul.mubr.bf16.gmra.mrb[0].mxu0 %v1272
    %v1582 = vpop.f32.mrb[0].mxu0
    %v1583 = vadd.f32 0.0, %v1582
    %v1584 = vpop.f32.mrb[0].mxu0
    %v1585 = vpop.f32.mrb[0].mxu0
    %v1586 = vadd.f32 0.0, %v1585
    %v1587 = vpop.f32.mrb[0].mxu0
    %1588 = vmatprep.mubr.bf16.mxu0 0
    %1589 = vmatmul.mubr.bf16.gmra.mrb[0].mxu0 %v1273
    %v1590 = vpop.f32.mrb[0].mxu0
    %v1591 = vadd.f32 0.0, %v1590
    %v1592 = vpop.f32.mrb[0].mxu0
    %v1593 = vpop.f32.mrb[0].mxu0
    %v1594 = vadd.f32 0.0, %v1593
    %v1595 = vpop.f32.mrb[0].mxu0
    %1596 = vdwg.mxu0
    %v1597 = vpack.c.bf16 %v1393, %v1390
    %v1598 = vpack.c.bf16 %v1401, %v1398
    %v1599 = vpack.c.bf16 %v1409, %v1406
    %v1600 = vpack.c.bf16 %v1417, %v1414
    %v1601 = vpack.c.bf16 %v1425, %v1422
    %v1602 = vpack.c.bf16 %v1433, %v1430
    %v1603 = vpack.c.bf16 %v1441, %v1438
    %v1604 = vpack.c.bf16 %v1449, %v1446
    %1605 = vmatprep.subr.bf16.mxu0 0
    %1606 = vmatpush1.bf16.msra.mxu0 %v1597
    %1607 = vmatprep.subr.bf16.mxu0 0
    %1608 = vmatpush1.bf16.msra.mxu0 %v1598
    %1609 = vmatprep.subr.bf16.mxu0 0
    %1610 = vmatpush1.bf16.msra.mxu0 %v1599
    %1611 = vmatprep.subr.bf16.mxu0 0
    %1612 = vmatpush1.bf16.msra.mxu0 %v1600
    %1613 = vmatprep.subr.bf16.mxu0 0
    %1614 = vmatpush1.bf16.msra.mxu0 %v1601
    %1615 = vmatprep.subr.bf16.mxu0 0
    %1616 = vmatpush1.bf16.msra.mxu0 %v1602
    %1617 = vmatprep.subr.bf16.mxu0 0
    %1618 = vmatpush1.bf16.msra.mxu0 %v1603
    %1619 = vmatprep.subr.bf16.mxu0 0
    %1620 = vmatpush1.bf16.msra.mxu0 %v1604
    %1621 = vmatprep.subr.bf16.mxu0 0
    %1622 = vmatpush1.bf16.msra.mxu0 0
    %1623 = vmatprep.subr.bf16.mxu0 0
    %1624 = vmatpush1.bf16.msra.mxu0 0
    %1625 = vmatprep.subr.bf16.mxu0 0
    %1626 = vmatpush1.bf16.msra.mxu0 0
    %1627 = vmatprep.subr.bf16.mxu0 0
    %1628 = vmatpush1.bf16.msra.mxu0 0
    %1629 = vmatprep.subr.bf16.mxu0 0
    %1630 = vmatpush1.bf16.msra.mxu0 0
    %1631 = vmatprep.subr.bf16.mxu0 0
    %1632 = vmatpush1.bf16.msra.mxu0 0
    %1633 = vmatprep.subr.bf16.mxu0 0
    %1634 = vmatpush1.bf16.msra.mxu0 0
    %1635 = vmatprep.subr.bf16.mxu0 0
    %1636 = vmatpush1.bf16.msra.mxu0 0
    %1637 = vmatprep.mubr.bf16.mxu0 0
    %1638 = vmatmul.mubr.bf16.gmra.mrb[0].mxu0 %v494
    %v1639 = vpop.f32.mrb[0].mxu0
    %v1640 = vadd.f32 0.0, %v1639
    %v1641 = vpop.f32.mrb[0].mxu0
    %v1642 = vpop.f32.mrb[0].mxu0
    %v1643 = vadd.f32 0.0, %v1642
    %v1644 = vpop.f32.mrb[0].mxu0
    %1645 = vmatprep.mubr.bf16.mxu0 0
    %1646 = vmatmul.mubr.bf16.gmra.mrb[0].mxu0 %v495
    %v1647 = vpop.f32.mrb[0].mxu0
    %v1648 = vadd.f32 0.0, %v1647
    %v1649 = vpop.f32.mrb[0].mxu0
    %v1650 = vpop.f32.mrb[0].mxu0
    %v1651 = vadd.f32 0.0, %v1650
    %v1652 = vpop.f32.mrb[0].mxu0
    %1653 = vmatprep.mubr.bf16.mxu0 0
    %1654 = vmatmul.mubr.bf16.gmra.mrb[0].mxu0 %v496
    %v1655 = vpop.f32.mrb[0].mxu0
    %v1656 = vadd.f32 0.0, %v1655
    %v1657 = vpop.f32.mrb[0].mxu0
    %v1658 = vpop.f32.mrb[0].mxu0
    %v1659 = vadd.f32 0.0, %v1658
    %v1660 = vpop.f32.mrb[0].mxu0
    %1661 = vmatprep.mubr.bf16.mxu0 0
    %1662 = vmatmul.mubr.bf16.gmra.mrb[0].mxu0 %v497
    %v1663 = vpop.f32.mrb[0].mxu0
    %v1664 = vadd.f32 0.0, %v1663
    %v1665 = vpop.f32.mrb[0].mxu0
    %v1666 = vpop.f32.mrb[0].mxu0
    %v1667 = vadd.f32 0.0, %v1666
    %v1668 = vpop.f32.mrb[0].mxu0
    %1669 = vmatprep.mubr.bf16.mxu0 0
    %1670 = vmatmul.mubr.bf16.gmra.mrb[0].mxu0 %v498
    %v1671 = vpop.f32.mrb[0].mxu0
    %v1672 = vadd.f32 0.0, %v1671
    %v1673 = vpop.f32.mrb[0].mxu0
    %v1674 = vpop.f32.mrb[0].mxu0
    %v1675 = vadd.f32 0.0, %v1674
    %v1676 = vpop.f32.mrb[0].mxu0
    %1677 = vmatprep.mubr.bf16.mxu0 0
    %1678 = vmatmul.mubr.bf16.gmra.mrb[0].mxu0 %v499
    %v1679 = vpop.f32.mrb[0].mxu0
    %v1680 = vadd.f32 0.0, %v1679
    %v1681 = vpop.f32.mrb[0].mxu0
    %v1682 = vpop.f32.mrb[0].mxu0
    %v1683 = vadd.f32 0.0, %v1682
    %v1684 = vpop.f32.mrb[0].mxu0
    %1685 = vmatprep.mubr.bf16.mxu0 0
    %1686 = vmatmul.mubr.bf16.gmra.mrb[0].mxu0 %v500
    %v1687 = vpop.f32.mrb[0].mxu0
    %v1688 = vadd.f32 0.0, %v1687
    %v1689 = vpop.f32.mrb[0].mxu0
    %v1690 = vpop.f32.mrb[0].mxu0
    %v1691 = vadd.f32 0.0, %v1690
    %v1692 = vpop.f32.mrb[0].mxu0
    %1693 = vmatprep.mubr.bf16.mxu0 0
    %1694 = vmatmul.mubr.bf16.gmra.mrb[0].mxu0 %v501
    %v1695 = vpop.f32.mrb[0].mxu0
    %v1696 = vadd.f32 0.0, %v1695
    %v1697 = vpop.f32.mrb[0].mxu0
    %v1698 = vpop.f32.mrb[0].mxu0
    %v1699 = vadd.f32 0.0, %v1698
    %v1700 = vpop.f32.mrb[0].mxu0
    %1701 = vdwg.mxu0
    %v1702 = vmul.f32 %v610, %v1640
    %v1703 = vmul.f32 %v615, %v1643
    %v1704 = vmul.f32 %v620, %v1648
    %v1705 = vmul.f32 %v625, %v1651
    %v1706 = vmul.f32 %v630, %v1656
    %v1707 = vmul.f32 %v635, %v1659
    %v1708 = vmul.f32 %v640, %v1664
    %v1709 = vmul.f32 %v645, %v1667
    %v1710 = vmul.f32 %v650, %v1672
    %v1711 = vmul.f32 %v655, %v1675
    %v1712 = vmul.f32 %v660, %v1680
    %v1713 = vmul.f32 %v665, %v1683
    %v1714 = vmul.f32 %v670, %v1688
    %v1715 = vmul.f32 %v675, %v1691
    %v1716 = vmul.f32 %v680, %v1696
    %v1717 = vmul.f32 %v685, %v1699
    %v1718 = vadd.f32 %v1702, %v1535
    %v1719 = vadd.f32 %v1703, %v1538
    %v1720 = vadd.f32 %v1704, %v1543
    %v1721 = vadd.f32 %v1705, %v1546
    %v1722 = vadd.f32 %v1706, %v1551
    %v1723 = vadd.f32 %v1707, %v1554
    %v1724 = vadd.f32 %v1708, %v1559
    %v1725 = vadd.f32 %v1709, %v1562
    %v1726 = vadd.f32 %v1710, %v1567
    %v1727 = vadd.f32 %v1711, %v1570
    %v1728 = vadd.f32 %v1712, %v1575
    %v1729 = vadd.f32 %v1713, %v1578
    %v1730 = vadd.f32 %v1714, %v1583
    %v1731 = vadd.f32 %v1715, %v1586
    %v1732 = vadd.f32 %v1716, %v1591
    %v1733 = vadd.f32 %v1717, %v1594
    %s1734 = scalar_lea.vmem %s4, 2
    %v1735 = vld [vmem:[%s1734] sm:$0x1]
    %v1737 = vlaneseq
    %v1738 = vshrl.u32 %v1737, 7
    %v1739 = vsub.s32 0, %v1738
    %v1740 = vrot.slane %v1735, %v1739
    %v1742 = vadd.f32 %v1718, %v1740
    %v1743 = vadd.f32 %v1719, %v1740
    %v1744 = vadd.f32 %v1720, %v1740
    %v1745 = vadd.f32 %v1721, %v1740
    %v1746 = vadd.f32 %v1722, %v1740
    %v1747 = vadd.f32 %v1723, %v1740
    %v1748 = vadd.f32 %v1724, %v1740
    %v1749 = vadd.f32 %v1725, %v1740
    %v1750 = vadd.f32 %v1726, %v1740
    %v1751 = vadd.f32 %v1727, %v1740
    %v1752 = vadd.f32 %v1728, %v1740
    %v1753 = vadd.f32 %v1729, %v1740
    %v1754 = vadd.f32 %v1730, %v1740
    %v1755 = vadd.f32 %v1731, %v1740
    %v1756 = vadd.f32 %v1732, %v1740
    %v1757 = vadd.f32 %v1733, %v1740
    %v1758 = vlaneseq
    %v1759 = vand.u32 %v1758, 127
    %vm1760 = vcmp.lt.s32.totalorder %v1759, 8
    %v1761 = vsel %vm1760, %v1742, -1e+30
    %v1762 = vsel %vm1760, %v1743, -1e+30
    %v1763 = vsel %vm1760, %v1744, -1e+30
    %v1764 = vsel %vm1760, %v1745, -1e+30
    %v1765 = vsel %vm1760, %v1746, -1e+30
    %v1766 = vsel %vm1760, %v1747, -1e+30
    %v1767 = vsel %vm1760, %v1748, -1e+30
    %v1768 = vsel %vm1760, %v1749, -1e+30
    %v1769 = vsel %vm1760, %v1750, -1e+30
    %v1770 = vsel %vm1760, %v1751, -1e+30
    %v1771 = vsel %vm1760, %v1752, -1e+30
    %v1772 = vsel %vm1760, %v1753, -1e+30
    %v1773 = vsel %vm1760, %v1754, -1e+30
    %v1774 = vsel %vm1760, %v1755, -1e+30
    %v1775 = vsel %vm1760, %v1756, -1e+30
    %v1776 = vsel %vm1760, %v1757, -1e+30
    %1777 = vmax.xlane.f32.xlu0 %v1761
    %v1778 = vpop.xlane.xlu0 %1777
    %1779 = vmax.xlane.f32.xlu0 %v1762
    %v1780 = vpop.xlane.xlu0 %1779
    %1781 = vmax.xlane.f32.xlu0 %v1763
    %v1782 = vpop.xlane.xlu0 %1781
    %1783 = vmax.xlane.f32.xlu0 %v1764
    %v1784 = vpop.xlane.xlu0 %1783
    %1785 = vmax.xlane.f32.xlu0 %v1765
    %v1786 = vpop.xlane.xlu0 %1785
    %1787 = vmax.xlane.f32.xlu0 %v1766
    %v1788 = vpop.xlane.xlu0 %1787
    %1789 = vmax.xlane.f32.xlu0 %v1767
    %v1790 = vpop.xlane.xlu0 %1789
    %1791 = vmax.xlane.f32.xlu0 %v1768
    %v1792 = vpop.xlane.xlu0 %1791
    %1793 = vmax.xlane.f32.xlu0 %v1769
    %v1794 = vpop.xlane.xlu0 %1793
    %1795 = vmax.xlane.f32.xlu0 %v1770
    %v1796 = vpop.xlane.xlu0 %1795
    %1797 = vmax.xlane.f32.xlu0 %v1771
    %v1798 = vpop.xlane.xlu0 %1797
    %1799 = vmax.xlane.f32.xlu0 %v1772
    %v1800 = vpop.xlane.xlu0 %1799
    %1801 = vmax.xlane.f32.xlu0 %v1773
    %v1802 = vpop.xlane.xlu0 %1801
    %1803 = vmax.xlane.f32.xlu0 %v1774
    %v1804 = vpop.xlane.xlu0 %1803
    %1805 = vmax.xlane.f32.xlu0 %v1775
    %v1806 = vpop.xlane.xlu0 %1805
    %1807 = vmax.xlane.f32.xlu0 %v1776
    %v1808 = vpop.xlane.xlu0 %1807
    %v1809 = vsub.f32 %v1761, %v1778
    %v1810 = vsub.f32 %v1762, %v1780
    %v1811 = vsub.f32 %v1763, %v1782
    %v1812 = vsub.f32 %v1764, %v1784
    %v1813 = vsub.f32 %v1765, %v1786
    %v1814 = vsub.f32 %v1766, %v1788
    %v1815 = vsub.f32 %v1767, %v1790
    %v1816 = vsub.f32 %v1768, %v1792
    %v1817 = vsub.f32 %v1769, %v1794
    %v1818 = vsub.f32 %v1770, %v1796
    %v1819 = vsub.f32 %v1771, %v1798
    %v1820 = vsub.f32 %v1772, %v1800
    %v1821 = vsub.f32 %v1773, %v1802
    %v1822 = vsub.f32 %v1774, %v1804
    %v1823 = vsub.f32 %v1775, %v1806
    %v1824 = vsub.f32 %v1776, %v1808
    %v1825 = vmul.f32 %v1809, 1.442695
    %v1826 = vpow.pop %v1825
    %v1827 = vmul.f32 %v1810, 1.442695
    %v1828 = vpow.pop %v1827
    %v1829 = vmul.f32 %v1811, 1.442695
    %v1830 = vpow.pop %v1829
    %v1831 = vmul.f32 %v1812, 1.442695
    %v1832 = vpow.pop %v1831
    %v1833 = vmul.f32 %v1813, 1.442695
    %v1834 = vpow.pop %v1833
    %v1835 = vmul.f32 %v1814, 1.442695
    %v1836 = vpow.pop %v1835
    %v1837 = vmul.f32 %v1815, 1.442695
    %v1838 = vpow.pop %v1837
    %v1839 = vmul.f32 %v1816, 1.442695
    %v1840 = vpow.pop %v1839
    %v1841 = vmul.f32 %v1817, 1.442695
    %v1842 = vpow.pop %v1841
    %v1843 = vmul.f32 %v1818, 1.442695
    %v1844 = vpow.pop %v1843
    %v1845 = vmul.f32 %v1819, 1.442695
    %v1846 = vpow.pop %v1845
    %v1847 = vmul.f32 %v1820, 1.442695
    %v1848 = vpow.pop %v1847
    %v1849 = vmul.f32 %v1821, 1.442695
    %v1850 = vpow.pop %v1849
    %v1851 = vmul.f32 %v1822, 1.442695
    %v1852 = vpow.pop %v1851
    %v1853 = vmul.f32 %v1823, 1.442695
    %v1854 = vpow.pop %v1853
    %v1855 = vmul.f32 %v1824, 1.442695
    %v1856 = vpow.pop %v1855
    %1857 = vadd.xlane.f32.xlu0 %v1826
    %v1858 = vpop.xlane.xlu0 %1857
    %1859 = vadd.xlane.f32.xlu0 %v1828
    %v1860 = vpop.xlane.xlu0 %1859
    %1861 = vadd.xlane.f32.xlu0 %v1830
    %v1862 = vpop.xlane.xlu0 %1861
    %1863 = vadd.xlane.f32.xlu0 %v1832
    %v1864 = vpop.xlane.xlu0 %1863
    %1865 = vadd.xlane.f32.xlu0 %v1834
    %v1866 = vpop.xlane.xlu0 %1865
    %1867 = vadd.xlane.f32.xlu0 %v1836
    %v1868 = vpop.xlane.xlu0 %1867
    %1869 = vadd.xlane.f32.xlu0 %v1838
    %v1870 = vpop.xlane.xlu0 %1869
    %1871 = vadd.xlane.f32.xlu0 %v1840
    %v1872 = vpop.xlane.xlu0 %1871
    %1873 = vadd.xlane.f32.xlu0 %v1842
    %v1874 = vpop.xlane.xlu0 %1873
    %1875 = vadd.xlane.f32.xlu0 %v1844
    %v1876 = vpop.xlane.xlu0 %1875
    %1877 = vadd.xlane.f32.xlu0 %v1846
    %v1878 = vpop.xlane.xlu0 %1877
    %1879 = vadd.xlane.f32.xlu0 %v1848
    %v1880 = vpop.xlane.xlu0 %1879
    %1881 = vadd.xlane.f32.xlu0 %v1850
    %v1882 = vpop.xlane.xlu0 %1881
    %1883 = vadd.xlane.f32.xlu0 %v1852
    %v1884 = vpop.xlane.xlu0 %1883
    %1885 = vadd.xlane.f32.xlu0 %v1854
    %v1886 = vpop.xlane.xlu0 %1885
    %1887 = vadd.xlane.f32.xlu0 %v1856
    %v1888 = vpop.xlane.xlu0 %1887
    %v1889 = vlog2.pop %v1858
    %v1890 = vmul.f32 %v1889, 0.6931472
    %v1891 = vlog2.pop %v1860
    %v1892 = vmul.f32 %v1891, 0.6931472
    %v1893 = vlog2.pop %v1862
    %v1894 = vmul.f32 %v1893, 0.6931472
    %v1895 = vlog2.pop %v1864
    %v1896 = vmul.f32 %v1895, 0.6931472
    %v1897 = vlog2.pop %v1866
    %v1898 = vmul.f32 %v1897, 0.6931472
    %v1899 = vlog2.pop %v1868
    %v1900 = vmul.f32 %v1899, 0.6931472
    %v1901 = vlog2.pop %v1870
    %v1902 = vmul.f32 %v1901, 0.6931472
    %v1903 = vlog2.pop %v1872
    %v1904 = vmul.f32 %v1903, 0.6931472
    %v1905 = vlog2.pop %v1874
    %v1906 = vmul.f32 %v1905, 0.6931472
    %v1907 = vlog2.pop %v1876
    %v1908 = vmul.f32 %v1907, 0.6931472
    %v1909 = vlog2.pop %v1878
    %v1910 = vmul.f32 %v1909, 0.6931472
    %v1911 = vlog2.pop %v1880
    %v1912 = vmul.f32 %v1911, 0.6931472
    %v1913 = vlog2.pop %v1882
    %v1914 = vmul.f32 %v1913, 0.6931472
    %v1915 = vlog2.pop %v1884
    %v1916 = vmul.f32 %v1915, 0.6931472
    %v1917 = vlog2.pop %v1886
    %v1918 = vmul.f32 %v1917, 0.6931472
    %v1919 = vlog2.pop %v1888
    %v1920 = vmul.f32 %v1919, 0.6931472
    %v1921 = vsub.f32 %v1809, %v1890
    %v1922 = vsub.f32 %v1810, %v1892
    %v1923 = vsub.f32 %v1811, %v1894
    %v1924 = vsub.f32 %v1812, %v1896
    %v1925 = vsub.f32 %v1813, %v1898
    %v1926 = vsub.f32 %v1814, %v1900
    %v1927 = vsub.f32 %v1815, %v1902
    %v1928 = vsub.f32 %v1816, %v1904
    %v1929 = vsub.f32 %v1817, %v1906
    %v1930 = vsub.f32 %v1818, %v1908
    %v1931 = vsub.f32 %v1819, %v1910
    %v1932 = vsub.f32 %v1820, %v1912
    %v1933 = vsub.f32 %v1821, %v1914
    %v1934 = vsub.f32 %v1822, %v1916
    %v1935 = vsub.f32 %v1823, %v1918
    %v1936 = vsub.f32 %v1824, %v1920
    %1937 = vst [vmem:[#allocation5] sm:$0xff] %v1921
    %1938 = vst [vmem:[#allocation5 + $0x8] sm:$0xff] %v1922
    %1939 = vst [vmem:[#allocation5 + $0x10] sm:$0xff] %v1923
    %1940 = vst [vmem:[#allocation5 + $0x18] sm:$0xff] %v1924
    %1941 = vst [vmem:[#allocation5 + $0x20] sm:$0xff] %v1925
    %1942 = vst [vmem:[#allocation5 + $0x28] sm:$0xff] %v1926
    %1943 = vst [vmem:[#allocation5 + $0x30] sm:$0xff] %v1927
    %1944 = vst [vmem:[#allocation5 + $0x38] sm:$0xff] %v1928
    %1945 = vst [vmem:[#allocation5 + $0x40] sm:$0xff] %v1929
    %1946 = vst [vmem:[#allocation5 + $0x48] sm:$0xff] %v1930
    %1947 = vst [vmem:[#allocation5 + $0x50] sm:$0xff] %v1931
    %1948 = vst [vmem:[#allocation5 + $0x58] sm:$0xff] %v1932
    %1949 = vst [vmem:[#allocation5 + $0x60] sm:$0xff] %v1933
    %1950 = vst [vmem:[#allocation5 + $0x68] sm:$0xff] %v1934
    %1951 = vst [vmem:[#allocation5 + $0x70] sm:$0xff] %v1935
    %1952 = vst [vmem:[#allocation5 + $0x78] sm:$0xff] %v1936
    // Predicated region
    $region26: #{tpu_custom_call.1} parent=1 // pred_check
      _
    $region27: #{tpu_custom_call.1} parent=1 // pred_check_branch
      %1954 = sbr.rel (0) target = $region29
    $region28: #{tpu_custom_call.1} parent=1 // pred_region
      %s1956 = ssub.s32 2048, 2048
      %1957 = vsyncadd [#allocation4], %s1956
      %s1958 = sshll.u32 [#allocation5], 4
      %s1959 = int_to_ptr.vmem [resolvable:$true] %s1958
      %1964 = dma.vmem_to_hbm [thread:$0]  %s1959, 2048, %s5, [#allocation4], 128, 128, 8
    $region29: #{tpu_custom_call.1} parent=1 // pred_fallthru
      _
    // Predicated region
    $region30: #{tpu_custom_call.1} parent=1 // pred_check
      _
    $region31: #{tpu_custom_call.1} parent=1 // pred_check_branch
      %1966 = sbr.rel (0) target = $region33
    $region32: #{tpu_custom_call.1} parent=1 // pred_region
      %1967 = dma.done [#allocation4], 2048
    $region33: #{tpu_custom_call.1} parent=1 // pred_fallthru
      _
    %1968 = vsyncpa [#allocation3], 1
    %1969 = vsyncpa [#allocation4], 1

</llo_original>
